<compile_context>
chip_gen: v7x
topology: tpu7x:2x2x1
jax: 0.10.0
libtpu: 0.0.40
codegen_flags: <defaults>
</compile_context>

<pallas_src>
import jax
import jax.numpy as jnp
from jax.experimental import pallas as pl
from jax.experimental.pallas import tpu as pltpu

_LANE = 128      # TPU lane width; final layer is padded up to a multiple of this.
_SUBLANE = 8     # batch tiles are padded to a multiple of this.
_TILE_M = 256    # batch tile (rows) when batch is large.


def _dense_net_kernel(x_ref, w1_ref, w2_ref, w3_ref, w4_ref, bias_ref, o_ref):
    """out = relu(relu(relu(x@W1+b1)@W2+b2)@W3+b3)@W4 + b4, all in VMEM."""
    n1 = w1_ref.shape[1]
    n2 = w2_ref.shape[1]
    n3 = w3_ref.shape[1]
    o2, o3, o4 = n1, n1 + n2, n1 + n2 + n3

    h = x_ref[...]  # bf16 (tm, K)

    a = jnp.dot(h, w1_ref[...], preferred_element_type=jnp.float32)
    a = jnp.maximum(a + bias_ref[:, 0:n1], 0.0)

    a = jnp.dot(a.astype(jnp.bfloat16), w2_ref[...], preferred_element_type=jnp.float32)
    a = jnp.maximum(a + bias_ref[:, o2:o2 + n2], 0.0)

    a = jnp.dot(a.astype(jnp.bfloat16), w3_ref[...], preferred_element_type=jnp.float32)
    a = jnp.maximum(a + bias_ref[:, o3:o3 + n3], 0.0)

    a = jnp.dot(a.astype(jnp.bfloat16), w4_ref[...], preferred_element_type=jnp.float32)
    o_ref[...] = (a + bias_ref[:, o4:]).astype(o_ref.dtype)


def dense_network_forward(x, kparams):
    """x: (M, features_length) f32. Returns (M, num_classes) f32."""
    w1, w2, w3, w4p = kparams["weights"]          # bf16, BN-scale folded in
    bias_slab = kparams["bias_slab"]              # (1, n1+n2+n3+n_pad) f32
    num_classes = kparams["num_classes"]
    n_pad = w4p.shape[1]
    M, K = x.shape

    # Pick a batch tile: one sublane-aligned tile for small batches, 256 otherwise.
    if M <= _TILE_M:
        tm = max(_SUBLANE, ((M + _SUBLANE - 1) // _SUBLANE) * _SUBLANE)
    else:
        tm = _TILE_M
    m_pad = ((M + tm - 1) // tm) * tm

    x_bf16 = x.astype(jnp.bfloat16)
    if m_pad != M:
        x_bf16 = jnp.zeros((m_pad, K), jnp.bfloat16).at[:M].set(x_bf16)

    grid = (m_pad // tm,)

    out_pad = pl.pallas_call(
        _dense_net_kernel,
        out_shape=jax.ShapeDtypeStruct((m_pad, n_pad), jnp.float32),
        grid=grid,
        in_specs=[
            pl.BlockSpec((tm, K), lambda i: (i, 0)),
            pl.BlockSpec(w1.shape, lambda i: (0, 0)),       # weights stay resident
            pl.BlockSpec(w2.shape, lambda i: (0, 0)),
            pl.BlockSpec(w3.shape, lambda i: (0, 0)),
            pl.BlockSpec(w4p.shape, lambda i: (0, 0)),
            pl.BlockSpec(bias_slab.shape, lambda i: (0, 0)),
        ],
        out_specs=pl.BlockSpec((tm, n_pad), lambda i: (i, 0)),
        compiler_params=pltpu.CompilerParams(
            dimension_semantics=("parallel",),
            vmem_limit_bytes=32 << 20,
        ),
    )(x_bf16, w1, w2, w3, w4p, bias_slab)

    return out_pad[:M, :num_classes]


def init_params(key, features_length, num_classes):
    """Synthetic parameters matching Dense_Network's shapes, BN folded (eval mode)."""
    dims = [features_length, 256, 512, 1024, num_classes]
    eps = 1e-5
    weights_f32, biases_f32 = [], []
    for i in range(4):
        key, kw, kb, kg, kbeta, km, kv = jax.random.split(key, 7)
        fan_in, fan_out = dims[i], dims[i + 1]
        # Linear weight stored as (in, out); PyTorch keeps (out, in) — transposed here.
        w = jax.random.normal(kw, (fan_in, fan_out), jnp.float32) / jnp.sqrt(fan_in)
        b = jax.random.normal(kb, (fan_out,), jnp.float32) * 0.01
        if i < 3:
            # BatchNorm1d(fan_out), eval mode: y = gamma*(z-mean)/sqrt(var+eps)+beta
            gamma = 1.0 + 0.1 * jax.random.normal(kg, (fan_out,), jnp.float32)
            beta = 0.1 * jax.random.normal(kbeta, (fan_out,), jnp.float32)
            mean = 0.1 * jax.random.normal(km, (fan_out,), jnp.float32)
            var = jnp.abs(1.0 + 0.1 * jax.random.normal(kv, (fan_out,), jnp.float32))
            scale = gamma / jnp.sqrt(var + eps)
            w = w * scale[None, :]          # fold BN scale into the weight matrix
            b = (b - mean) * scale + beta   # fold linear bias + BN shift into one bias
        weights_f32.append(w)
        biases_f32.append(b)
    return weights_f32, biases_f32


def pack_kernel_params(weights_f32, biases_f32):
    """bf16 weights, lane-padded final layer, biases packed into one f32 slab."""
    w1, w2, w3, w4 = weights_f32
    b1, b2, b3, b4 = biases_f32
    num_classes = w4.shape[1]
    n_pad = ((num_classes + _LANE - 1) // _LANE) * _LANE
    w4p = jnp.zeros((w4.shape[0], n_pad), jnp.float32).at[:, :num_classes].set(w4)
    b4p = jnp.zeros((n_pad,), jnp.float32).at[:num_classes].set(b4)
    bias_slab = jnp.concatenate([b1, b2, b3, b4p]).reshape(1, -1).astype(jnp.float32)
    weights = tuple(w.astype(jnp.bfloat16) for w in (w1, w2, w3, w4p))
    return dict(weights=weights, bias_slab=bias_slab,
                num_classes=num_classes, n_pad=n_pad)


def reference_f32(x, weights_f32, biases_f32):
    out = x
    for i, (w, b) in enumerate(zip(weights_f32, biases_f32)):
        out = out @ w + b[None, :]
        if i < 3:
            out = jnp.maximum(out, 0.0)
    return out


def reference_bf16(x, kparams):
    """Mirrors the kernel numerics (bf16 MXU inputs, f32 accumulation) in pure JAX."""
    ws = kparams["weights"]
    bias = kparams["bias_slab"][0]
    sizes = [w.shape[1] for w in ws]
    offsets = [0, sizes[0], sizes[0] + sizes[1], sizes[0] + sizes[1] + sizes[2]]
    out = x
    for i, w in enumerate(ws):
        b = bias[offsets[i]:offsets[i] + sizes[i]]
        out = jnp.dot(out.astype(jnp.bfloat16), w,
                      preferred_element_type=jnp.float32) + b[None, :]
        if i < 3:
            out = jnp.maximum(out, 0.0)
    return out[:, :kparams["num_classes"]]


if __name__ == "__main__":
    features_length = 128
    num_classes = 10
    batch = 8

    key = jax.random.PRNGKey(0)
    key, kx = jax.random.split(key)
    x = jax.random.normal(kx, (batch, features_length), jnp.float32)

    weights_f32, biases_f32 = init_params(key, features_length, num_classes)
    kparams = pack_kernel_params(weights_f32, biases_f32)

    out = dense_network_forward(x, kparams)
    out = jax.block_until_ready(out)
    assert out.shape == (batch, num_classes)

    # Tight check vs a reference that matches the kernel's bf16/f32 numerics.
    ref_bf16 = reference_bf16(x, kparams)
    assert jnp.allclose(out, ref_bf16, atol=2e-3, rtol=2e-3), "mismatch vs bf16-matched reference"

    # Loose sanity check vs the full-f32 math (bf16 weights introduce ~1e-2 error).
    ref_f32 = reference_f32(x, weights_f32, biases_f32)
    assert jnp.allclose(out, ref_f32, atol=1e-1, rtol=1e-1), "mismatch vs f32 reference"

    print("KERNEL_OK")
</pallas_src>

<mosaic_0001>
module attributes {stable_mosaic.version = 11 : i64} {
  func.func @_dense_net_kernel(%arg0: i32, %arg1: memref<8x128xbf16, #tpu.memory_space<vmem>>, %arg2: memref<128x256xbf16, #tpu.memory_space<vmem>>, %arg3: memref<256x512xbf16, #tpu.memory_space<vmem>>, %arg4: memref<512x1024xbf16, #tpu.memory_space<vmem>>, %arg5: memref<1024x128xbf16, #tpu.memory_space<vmem>>, %arg6: memref<1x1920xf32, #tpu.memory_space<vmem>>, %arg7: memref<8x128xf32, #tpu.memory_space<vmem>>) attributes {dimension_semantics = [#tpu.dimension_semantics<parallel>], iteration_bounds = array<i64: 1>, scalar_prefetch = 0 : i64, scratch_operands = 0 : i64, tpu.core_type = #tpu.core_type<tc>, window_params = [{transform_indices = @transform_0, window_bounds = array<i64: 8, 128>}, {pipeline_mode = #tpu.pipeline_mode<synchronous>, transform_indices = @transform_1, window_bounds = array<i64: 128, 256>}, {pipeline_mode = #tpu.pipeline_mode<synchronous>, transform_indices = @transform_2, window_bounds = array<i64: 256, 512>}, {pipeline_mode = #tpu.pipeline_mode<synchronous>, transform_indices = @transform_3, window_bounds = array<i64: 512, 1024>}, {pipeline_mode = #tpu.pipeline_mode<synchronous>, transform_indices = @transform_4, window_bounds = array<i64: 1024, 128>}, {pipeline_mode = #tpu.pipeline_mode<synchronous>, transform_indices = @transform_5, window_bounds = array<i64: 1, 1920>}, {transform_indices = @transform_6, window_bounds = array<i64: 8, 128>}]} {
    %c0 = arith.constant 0 : index
    %c0_0 = arith.constant 0 : index
    %0 = vector.load %arg1[%c0, %c0_0] : memref<8x128xbf16, #tpu.memory_space<vmem>>, vector<8x128xbf16>
    %c0_1 = arith.constant 0 : index
    %c0_2 = arith.constant 0 : index
    %1 = vector.load %arg2[%c0_1, %c0_2] : memref<128x256xbf16, #tpu.memory_space<vmem>>, vector<128x256xbf16>
    %cst = arith.constant dense<0.000000e+00> : vector<8x256xf32>
    %2 = tpu.matmul %0, %1, %cst {dimension_numbers = #tpu.dot_dimension_numbers<[1], [0], [0], [1], [0, 0, 1, 1], [], []>} : vector<8x128xbf16>, vector<128x256xbf16>, vector<8x256xf32> -> vector<8x256xf32>
    %c0_3 = arith.constant 0 : index
    %c0_4 = arith.constant 0 : index
    %3 = vector.load %arg6[%c0_3, %c0_4] : memref<1x1920xf32, #tpu.memory_space<vmem>>, vector<1x256xf32>
    %4 = vector.broadcast %3 : vector<1x256xf32> to vector<8x256xf32>
    %5 = arith.addf %2, %4 : vector<8x256xf32>
    %cst_5 = arith.constant 0.000000e+00 : f32
    %6 = vector.broadcast %cst_5 : f32 to vector<8x256xf32>
    %7 = arith.maximumf %5, %6 : vector<8x256xf32>
    %8 = arith.truncf %7 : vector<8x256xf32> to vector<8x256xbf16>
    %c0_6 = arith.constant 0 : index
    %c0_7 = arith.constant 0 : index
    %9 = vector.load %arg3[%c0_6, %c0_7] : memref<256x512xbf16, #tpu.memory_space<vmem>>, vector<256x512xbf16>
    %cst_8 = arith.constant dense<0.000000e+00> : vector<8x512xf32>
    %10 = tpu.matmul %8, %9, %cst_8 {dimension_numbers = #tpu.dot_dimension_numbers<[1], [0], [0], [1], [0, 0, 1, 1], [], []>} : vector<8x256xbf16>, vector<256x512xbf16>, vector<8x512xf32> -> vector<8x512xf32>
    %c0_9 = arith.constant 0 : index
    %c256 = arith.constant 256 : index
    %11 = vector.load %arg6[%c0_9, %c256] : memref<1x1920xf32, #tpu.memory_space<vmem>>, vector<1x512xf32>
    %12 = vector.broadcast %11 : vector<1x512xf32> to vector<8x512xf32>
    %13 = arith.addf %10, %12 : vector<8x512xf32>
    %cst_10 = arith.constant 0.000000e+00 : f32
    %14 = vector.broadcast %cst_10 : f32 to vector<8x512xf32>
    %15 = arith.maximumf %13, %14 : vector<8x512xf32>
    %16 = arith.truncf %15 : vector<8x512xf32> to vector<8x512xbf16>
    %c0_11 = arith.constant 0 : index
    %c0_12 = arith.constant 0 : index
    %17 = vector.load %arg4[%c0_11, %c0_12] : memref<512x1024xbf16, #tpu.memory_space<vmem>>, vector<512x1024xbf16>
    %cst_13 = arith.constant dense<0.000000e+00> : vector<8x1024xf32>
    %18 = tpu.matmul %16, %17, %cst_13 {dimension_numbers = #tpu.dot_dimension_numbers<[1], [0], [0], [1], [0, 0, 1, 1], [], []>} : vector<8x512xbf16>, vector<512x1024xbf16>, vector<8x1024xf32> -> vector<8x1024xf32>
    %c0_14 = arith.constant 0 : index
    %c768 = arith.constant 768 : index
    %19 = vector.load %arg6[%c0_14, %c768] : memref<1x1920xf32, #tpu.memory_space<vmem>>, vector<1x1024xf32>
    %20 = vector.broadcast %19 : vector<1x1024xf32> to vector<8x1024xf32>
    %21 = arith.addf %18, %20 : vector<8x1024xf32>
    %cst_15 = arith.constant 0.000000e+00 : f32
    %22 = vector.broadcast %cst_15 : f32 to vector<8x1024xf32>
    %23 = arith.maximumf %21, %22 : vector<8x1024xf32>
    %24 = arith.truncf %23 : vector<8x1024xf32> to vector<8x1024xbf16>
    %c0_16 = arith.constant 0 : index
    %c0_17 = arith.constant 0 : index
    %25 = vector.load %arg5[%c0_16, %c0_17] : memref<1024x128xbf16, #tpu.memory_space<vmem>>, vector<1024x128xbf16>
    %cst_18 = arith.constant dense<0.000000e+00> : vector<8x128xf32>
    %26 = tpu.matmul %24, %25, %cst_18 {dimension_numbers = #tpu.dot_dimension_numbers<[1], [0], [0], [1], [0, 0, 1, 1], [], []>} : vector<8x1024xbf16>, vector<1024x128xbf16>, vector<8x128xf32> -> vector<8x128xf32>
    %c0_19 = arith.constant 0 : index
    %c1792 = arith.constant 1792 : index
    %27 = vector.load %arg6[%c0_19, %c1792] : memref<1x1920xf32, #tpu.memory_space<vmem>>, vector<1x128xf32>
    %28 = vector.broadcast %27 : vector<1x128xf32> to vector<8x128xf32>
    %29 = arith.addf %26, %28 : vector<8x128xf32>
    %c0_20 = arith.constant 0 : index
    %c0_21 = arith.constant 0 : index
    %30 = vector.load %arg7[%c0_20, %c0_21] : memref<8x128xf32, #tpu.memory_space<vmem>>, vector<8x128xf32>
    tpu.vector_store %arg7[%c0_20, %c0_21], %29 {strides = array<i32>} : memref<8x128xf32, #tpu.memory_space<vmem>>, vector<8x128xf32>,
    return
  }
  func.func @transform_0(%arg0: i32) -> (i32, i32) {
    %c0_i32 = arith.constant 0 : i32
    %c0_i32_0 = arith.constant 0 : i32
    return %arg0, %c0_i32 : i32, i32
  }
  func.func @transform_1(%arg0: i32) -> (i32, i32) {
    %c0_i32 = arith.constant 0 : i32
    %c0_i32_0 = arith.constant 0 : i32
    %c0_i32_1 = arith.constant 0 : i32
    return %c0_i32, %c0_i32_0 : i32, i32
  }
  func.func @transform_2(%arg0: i32) -> (i32, i32) {
    %c0_i32 = arith.constant 0 : i32
    %c0_i32_0 = arith.constant 0 : i32
    %c0_i32_1 = arith.constant 0 : i32
    return %c0_i32, %c0_i32_0 : i32, i32
  }
  func.func @transform_3(%arg0: i32) -> (i32, i32) {
    %c0_i32 = arith.constant 0 : i32
    %c0_i32_0 = arith.constant 0 : i32
    %c0_i32_1 = arith.constant 0 : i32
    return %c0_i32, %c0_i32_0 : i32, i32
  }
  func.func @transform_4(%arg0: i32) -> (i32, i32) {
    %c0_i32 = arith.constant 0 : i32
    %c0_i32_0 = arith.constant 0 : i32
    %c0_i32_1 = arith.constant 0 : i32
    return %c0_i32, %c0_i32_0 : i32, i32
  }
  func.func @transform_5(%arg0: i32) -> (i32, i32) {
    %c0_i32 = arith.constant 0 : i32
    %c0_i32_0 = arith.constant 0 : i32
    %c0_i32_1 = arith.constant 0 : i32
    return %c0_i32, %c0_i32_0 : i32, i32
  }
  func.func @transform_6(%arg0: i32) -> (i32, i32) {
    %c0_i32 = arith.constant 0 : i32
    %c0_i32_0 = arith.constant 0 : i32
    return %arg0, %c0_i32 : i32, i32
  }
}

</mosaic_0001>

<llo_original>
// kernel: tpu_custom_call.1
$region0: #{tpu_custom_call.1}
  #allocation0 [shape = 'u32[]', space=smem, size = 0x4, offset = 0x4, fixed_abs, tag = 'smem constant byte address 0x4 - core index']
  #allocation1 [shape = 'u32[144,128]{1,0:T(1,128)}', space=vmem, size = 0x12000, scoped, tag = 'internal scratch']
  %s0 = inlined_call_operand.hbm [shape: bf16[8,128], index: 0, kind: input, shape index: {}]
  %s1 = inlined_call_operand.hbm [shape: bf16[128,256], index: 1, kind: input, shape index: {}]
  %s2 = inlined_call_operand.hbm [shape: bf16[256,512], index: 2, kind: input, shape index: {}]
  %s3 = inlined_call_operand.hbm [shape: bf16[512,1024], index: 3, kind: input, shape index: {}]
  %s4 = inlined_call_operand.hbm [shape: bf16[1024,128], index: 4, kind: input, shape index: {}]
  %s5 = inlined_call_operand.vmem [shape: f32[1,1920], index: 5, kind: input, shape index: {}]
  %s6 = inlined_call_operand.hbm [shape: f32[8,128], index: 6, kind: output, shape index: {}]
  %s7 = sld [smem:[#allocation0]]
  $region54: #{tpu_custom_call.1} parent=0
    _
  %s9 = ssub.s32 1, %s7
  %s10 = scalar_select 0, %s9, %s7
  $region1: #{tpu_custom_call.1} parent=0
    #allocation2 [shape = 'u8[2048]{0}', space=vmem, size = 0x800, scoped, tag = 'input window, operand 0, single buffered']
    #allocation3 [shape = 's32[1]{0}', space=sflag, size = 0x4, scoped, tag = 'scoped memory for tpu_custom_call.1']
    #allocation4 [shape = 's32[1]{0}', space=sflag, size = 0x4, scoped, tag = 'scoped memory for tpu_custom_call.1']
    #allocation5 [shape = 'u8[65536]{0}', space=vmem, size = 0x10000, scoped, tag = 'input window, operand 1, single buffered']
    #allocation6 [shape = 's32[1]{0}', space=sflag, size = 0x4, scoped, tag = 'scoped memory for tpu_custom_call.1']
    #allocation7 [shape = 'u8[262144]{0}', space=vmem, size = 0x40000, scoped, tag = 'input window, operand 2, single buffered']
    #allocation8 [shape = 'u8[1048576]{0}', space=vmem, size = 0x100000, scoped, tag = 'input window, operand 3, single buffered']
    #allocation9 [shape = 's32[1]{0}', space=sflag, size = 0x4, scoped, tag = 'scoped memory for tpu_custom_call.1']
    #allocation10 [shape = 'u8[262144]{0}', space=vmem, size = 0x40000, scoped, tag = 'input window, operand 4, single buffered']
    #allocation11 [shape = 'u8[4096]{0}', space=vmem, size = 0x1000, scoped, tag = 'output window, operand 0, single buffered']
    %11 = vsyncpa [#allocation3], 0
    %12 = vsyncpa [#allocation6], 0
    %13 = vsyncpa [#allocation9], 0
    %14 = vsyncpa [#allocation4], 0
    // Predicated region
    $region2: #{tpu_custom_call.1} parent=1 // pred_check
      _
    $region3: #{tpu_custom_call.1} parent=1 // pred_check_branch
      %16 = sbr.rel (0) target = $region5
    $region4: #{tpu_custom_call.1} parent=1 // pred_region
      %s18 = ssub.s32 64, 64
      %19 = vsyncadd [#allocation3], %s18
      %s21 = sshll.u32 [#allocation2], 4
      %s22 = int_to_ptr.vmem [resolvable:$true] %s21
      %24 = dma.hbm_to_vmem [thread:$0]  %s0, 64, %s22, [#allocation3]
    $region5: #{tpu_custom_call.1} parent=1 // pred_fallthru
      _
    // Predicated region
    $region6: #{tpu_custom_call.1} parent=1 // pred_check
      _
    $region7: #{tpu_custom_call.1} parent=1 // pred_check_branch
      %26 = sbr.rel (0) target = $region9
    $region8: #{tpu_custom_call.1} parent=1 // pred_region
      %s28 = ssub.s32 2048, 2048
      %29 = vsyncadd [#allocation6], %s28
      %s30 = sshll.u32 [#allocation5], 4
      %s31 = int_to_ptr.vmem [resolvable:$true] %s30
      %36 = dma.hbm_to_vmem [thread:$0]  %s1, 2048, %s31, [#allocation6], 128, 128, 8
    $region9: #{tpu_custom_call.1} parent=1 // pred_fallthru
      _
    // Predicated region
    $region10: #{tpu_custom_call.1} parent=1 // pred_check
      _
    $region11: #{tpu_custom_call.1} parent=1 // pred_check_branch
      %38 = sbr.rel (0) target = $region13
    $region12: #{tpu_custom_call.1} parent=1 // pred_region
      %s40 = ssub.s32 8192, 8192
      %41 = vsyncadd [#allocation6], %s40
      %s42 = sshll.u32 [#allocation7], 4
      %s43 = int_to_ptr.vmem [resolvable:$true] %s42
      %48 = dma.hbm_to_vmem [thread:$0]  %s2, 8192, %s43, [#allocation6], 256, 256, 16
    $region13: #{tpu_custom_call.1} parent=1 // pred_fallthru
      _
    // Predicated region
    $region14: #{tpu_custom_call.1} parent=1 // pred_check
      _
    $region15: #{tpu_custom_call.1} parent=1 // pred_check_branch
      %50 = sbr.rel (0) target = $region17
    $region16: #{tpu_custom_call.1} parent=1 // pred_region
      %s52 = ssub.s32 32768, 32768
      %53 = vsyncadd [#allocation9], %s52
      %s54 = sshll.u32 [#allocation8], 4
      %s55 = int_to_ptr.vmem [resolvable:$true] %s54
      %60 = dma.hbm_to_vmem [thread:$0]  %s3, 32768, %s55, [#allocation9], 512, 512, 32
    $region17: #{tpu_custom_call.1} parent=1 // pred_fallthru
      _
    // Predicated region
    $region18: #{tpu_custom_call.1} parent=1 // pred_check
      _
    $region19: #{tpu_custom_call.1} parent=1 // pred_check_branch
      %62 = sbr.rel (0) target = $region21
    $region20: #{tpu_custom_call.1} parent=1 // pred_region
      %s64 = ssub.s32 8192, 8192
      %65 = vsyncadd [#allocation9], %s64
      %s66 = sshll.u32 [#allocation10], 4
      %s67 = int_to_ptr.vmem [resolvable:$true] %s66
      %72 = dma.hbm_to_vmem [thread:$0]  %s4, 8192, %s67, [#allocation9], 64, 64, 4
    $region21: #{tpu_custom_call.1} parent=1 // pred_fallthru
      _
    // Predicated region
    $region22: #{tpu_custom_call.1} parent=1 // pred_check
      _
    $region23: #{tpu_custom_call.1} parent=1 // pred_check_branch
      %74 = sbr.rel (0) target = $region25
    $region24: #{tpu_custom_call.1} parent=1 // pred_region
      _
    $region25: #{tpu_custom_call.1} parent=1 // pred_fallthru
      _
    // Predicated region
    $region26: #{tpu_custom_call.1} parent=1 // pred_check
      _
    $region27: #{tpu_custom_call.1} parent=1 // pred_check_branch
      %76 = sbr.rel (0) target = $region29
    $region28: #{tpu_custom_call.1} parent=1 // pred_region
      %77 = dma.done [#allocation3], 64
    $region29: #{tpu_custom_call.1} parent=1 // pred_fallthru
      _
    // Predicated region
    $region30: #{tpu_custom_call.1} parent=1 // pred_check
      _
    $region31: #{tpu_custom_call.1} parent=1 // pred_check_branch
      %79 = sbr.rel (0) target = $region33
    $region32: #{tpu_custom_call.1} parent=1 // pred_region
      %80 = dma.done [#allocation6], 2048
    $region33: #{tpu_custom_call.1} parent=1 // pred_fallthru
      _
    // Predicated region
    $region34: #{tpu_custom_call.1} parent=1 // pred_check
      _
    $region35: #{tpu_custom_call.1} parent=1 // pred_check_branch
      %82 = sbr.rel (0) target = $region37
    $region36: #{tpu_custom_call.1} parent=1 // pred_region
      %83 = dma.done [#allocation6], 8192
    $region37: #{tpu_custom_call.1} parent=1 // pred_fallthru
      _
    // Predicated region
    $region38: #{tpu_custom_call.1} parent=1 // pred_check
      _
    $region39: #{tpu_custom_call.1} parent=1 // pred_check_branch
      %85 = sbr.rel (0) target = $region41
    $region40: #{tpu_custom_call.1} parent=1 // pred_region
      %86 = dma.done [#allocation9], 32768
    $region41: #{tpu_custom_call.1} parent=1 // pred_fallthru
      _
    // Predicated region
    $region42: #{tpu_custom_call.1} parent=1 // pred_check
      _
    $region43: #{tpu_custom_call.1} parent=1 // pred_check_branch
      %88 = sbr.rel (0) target = $region45
    $region44: #{tpu_custom_call.1} parent=1 // pred_region
      %89 = dma.done [#allocation9], 8192
    $region45: #{tpu_custom_call.1} parent=1 // pred_fallthru
      _
    %v91 = vld [vmem:[#allocation2] sm:$0xf]
    %v92 = vld [vmem:[#allocation5] sm:$0xff]
    %v93 = vld [vmem:[#allocation5 + $0x8] sm:$0xff]
    %v94 = vld [vmem:[#allocation5 + $0x10] sm:$0xff]
    %v95 = vld [vmem:[#allocation5 + $0x18] sm:$0xff]
    %v96 = vld [vmem:[#allocation5 + $0x20] sm:$0xff]
    %v97 = vld [vmem:[#allocation5 + $0x28] sm:$0xff]
    %v98 = vld [vmem:[#allocation5 + $0x30] sm:$0xff]
    %v99 = vld [vmem:[#allocation5 + $0x38] sm:$0xff]
    %v100 = vld [vmem:[#allocation5 + $0x40] sm:$0xff]
    %v101 = vld [vmem:[#allocation5 + $0x48] sm:$0xff]
    %v102 = vld [vmem:[#allocation5 + $0x50] sm:$0xff]
    %v103 = vld [vmem:[#allocation5 + $0x58] sm:$0xff]
    %v104 = vld [vmem:[#allocation5 + $0x60] sm:$0xff]
    %v105 = vld [vmem:[#allocation5 + $0x68] sm:$0xff]
    %v106 = vld [vmem:[#allocation5 + $0x70] sm:$0xff]
    %v107 = vld [vmem:[#allocation5 + $0x78] sm:$0xff]
    %v108 = vld [vmem:[%s5] sm:$0x3]
    %v110 = vlaneseq
    %v111 = vshrl.u32 %v110, 7
    %v112 = vsub.s32 0, %v111
    %v113 = vrot.slane %v108, %v112
    %v114 = vlaneseq
    %v115 = vshrl.u32 %v114, 7
    %v116 = vsub.s32 1, %v115
    %v117 = vrot.slane %v108, %v116
    %v136 = vunpack.c.l.b16 %v92
    %v137 = vunpack.c.h.b16 %v92
    %v138 = vunpack.c.l.b16 %v93
    %v139 = vunpack.c.h.b16 %v93
    %v140 = vunpack.c.l.b16 %v94
    %v141 = vunpack.c.h.b16 %v94
    %v142 = vunpack.c.l.b16 %v95
    %v143 = vunpack.c.h.b16 %v95
    %v144 = vunpack.c.l.b16 %v96
    %v145 = vunpack.c.h.b16 %v96
    %v146 = vunpack.c.l.b16 %v97
    %v147 = vunpack.c.h.b16 %v97
    %v148 = vunpack.c.l.b16 %v98
    %v149 = vunpack.c.h.b16 %v98
    %v150 = vunpack.c.l.b16 %v99
    %v151 = vunpack.c.h.b16 %v99
    %v152 = vunpack.c.l.b16 %v100
    %v153 = vunpack.c.h.b16 %v100
    %v154 = vunpack.c.l.b16 %v101
    %v155 = vunpack.c.h.b16 %v101
    %v156 = vunpack.c.l.b16 %v102
    %v157 = vunpack.c.h.b16 %v102
    %v158 = vunpack.c.l.b16 %v103
    %v159 = vunpack.c.h.b16 %v103
    %v160 = vunpack.c.l.b16 %v104
    %v161 = vunpack.c.h.b16 %v104
    %v162 = vunpack.c.l.b16 %v105
    %v163 = vunpack.c.h.b16 %v105
    %v164 = vunpack.c.l.b16 %v106
    %v165 = vunpack.c.h.b16 %v106
    %v166 = vunpack.c.l.b16 %v107
    %v167 = vunpack.c.h.b16 %v107
    %v168 = vpack.c.b16 %v138, %v136
    %v169 = vpack.c.b16 %v139, %v137
    %v170 = vpack.c.b16 %v142, %v140
    %v171 = vpack.c.b16 %v143, %v141
    %v172 = vpack.c.b16 %v146, %v144
    %v173 = vpack.c.b16 %v147, %v145
    %v174 = vpack.c.b16 %v150, %v148
    %v175 = vpack.c.b16 %v151, %v149
    %v176 = vpack.c.b16 %v154, %v152
    %v177 = vpack.c.b16 %v155, %v153
    %v178 = vpack.c.b16 %v158, %v156
    %v179 = vpack.c.b16 %v159, %v157
    %v180 = vpack.c.b16 %v162, %v160
    %v181 = vpack.c.b16 %v163, %v161
    %v182 = vpack.c.b16 %v166, %v164
    %v183 = vpack.c.b16 %v167, %v165
    %200 = vmatprep.subr.bf16.mxu0 %v169
    %201 = vmatpush1.bf16.msra.mxu0 %v168
    %202 = vmatprep.subr.bf16.mxu0 %v171
    %203 = vmatpush1.bf16.msra.mxu0 %v170
    %204 = vmatprep.subr.bf16.mxu0 %v173
    %205 = vmatpush1.bf16.msra.mxu0 %v172
    %206 = vmatprep.subr.bf16.mxu0 %v175
    %207 = vmatpush1.bf16.msra.mxu0 %v174
    %208 = vmatprep.subr.bf16.mxu0 %v177
    %209 = vmatpush1.bf16.msra.mxu0 %v176
    %210 = vmatprep.subr.bf16.mxu0 %v179
    %211 = vmatpush1.bf16.msra.mxu0 %v178
    %212 = vmatprep.subr.bf16.mxu0 %v181
    %213 = vmatpush1.bf16.msra.mxu0 %v180
    %214 = vmatprep.subr.bf16.mxu0 %v183
    %215 = vmatpush1.bf16.msra.mxu0 %v182
    %216 = vmatprep.subr.bf16.mxu0 0
    %217 = vmatpush1.bf16.msra.mxu0 0
    %218 = vmatprep.subr.bf16.mxu0 0
    %219 = vmatpush1.bf16.msra.mxu0 0
    %220 = vmatprep.subr.bf16.mxu0 0
    %221 = vmatpush1.bf16.msra.mxu0 0
    %222 = vmatprep.subr.bf16.mxu0 0
    %223 = vmatpush1.bf16.msra.mxu0 0
    %224 = vmatprep.subr.bf16.mxu0 0
    %225 = vmatpush1.bf16.msra.mxu0 0
    %226 = vmatprep.subr.bf16.mxu0 0
    %227 = vmatpush1.bf16.msra.mxu0 0
    %228 = vmatprep.subr.bf16.mxu0 0
    %229 = vmatpush1.bf16.msra.mxu0 0
    %230 = vmatprep.subr.bf16.mxu0 0
    %231 = vmatpush1.bf16.msra.mxu0 0
    %232 = vmatprep.mubr.bf16.mxu0 0
    %233 = vmatmul.mubr.bf16.gmra.mrb[0].mxu0 %v91
    %v234 = vpop.f32.mrb[0].mxu0
    %v235 = vadd.f32 %v113, %v234
    %v236 = vpop.f32.mrb[0].mxu0
    %v237 = vadd.f32 %v117, %v236
    %v238 = vpop.f32.mrb[0].mxu0
    %v239 = vpop.f32.mrb[0].mxu0
    %240 = vdwg.mxu0
    %v241 = vmax.f32 %v235, 0.0
    %v242 = vmax.f32 %v237, 0.0
    %v243 = vpack.c.bf16 %v241, %v241
    %v244 = vpack.c.bf16 %v242, %v242
    %v245 = vld [vmem:[#allocation7] sm:$0xff]
    %v246 = vld [vmem:[#allocation7 + $0x8] sm:$0xff]
    %v247 = vld [vmem:[#allocation7 + $0x10] sm:$0xff]
    %v248 = vld [vmem:[#allocation7 + $0x18] sm:$0xff]
    %v249 = vld [vmem:[#allocation7 + $0x20] sm:$0xff]
    %v250 = vld [vmem:[#allocation7 + $0x28] sm:$0xff]
    %v251 = vld [vmem:[#allocation7 + $0x30] sm:$0xff]
    %v252 = vld [vmem:[#allocation7 + $0x38] sm:$0xff]
    %v253 = vld [vmem:[#allocation7 + $0x40] sm:$0xff]
    %v254 = vld [vmem:[#allocation7 + $0x48] sm:$0xff]
    %v255 = vld [vmem:[#allocation7 + $0x50] sm:$0xff]
    %v256 = vld [vmem:[#allocation7 + $0x58] sm:$0xff]
    %v257 = vld [vmem:[#allocation7 + $0x60] sm:$0xff]
    %v258 = vld [vmem:[#allocation7 + $0x68] sm:$0xff]
    %v259 = vld [vmem:[#allocation7 + $0x70] sm:$0xff]
    %v260 = vld [vmem:[#allocation7 + $0x78] sm:$0xff]
    %v261 = vld [vmem:[#allocation7 + $0x80] sm:$0xff]
    %v262 = vld [vmem:[#allocation7 + $0x88] sm:$0xff]
    %v263 = vld [vmem:[#allocation7 + $0x90] sm:$0xff]
    %v264 = vld [vmem:[#allocation7 + $0x98] sm:$0xff]
    %v265 = vld [vmem:[#allocation7 + $0xa0] sm:$0xff]
    %v266 = vld [vmem:[#allocation7 + $0xa8] sm:$0xff]
    %v267 = vld [vmem:[#allocation7 + $0xb0] sm:$0xff]
    %v268 = vld [vmem:[#allocation7 + $0xb8] sm:$0xff]
    %v269 = vld [vmem:[#allocation7 + $0xc0] sm:$0xff]
    %v270 = vld [vmem:[#allocation7 + $0xc8] sm:$0xff]
    %v271 = vld [vmem:[#allocation7 + $0xd0] sm:$0xff]
    %v272 = vld [vmem:[#allocation7 + $0xd8] sm:$0xff]
    %v273 = vld [vmem:[#allocation7 + $0xe0] sm:$0xff]
    %v274 = vld [vmem:[#allocation7 + $0xe8] sm:$0xff]
    %v275 = vld [vmem:[#allocation7 + $0xf0] sm:$0xff]
    %v276 = vld [vmem:[#allocation7 + $0xf8] sm:$0xff]
    %v277 = vld [vmem:[#allocation7 + $0x100] sm:$0xff]
    %v278 = vld [vmem:[#allocation7 + $0x108] sm:$0xff]
    %v279 = vld [vmem:[#allocation7 + $0x110] sm:$0xff]
    %v280 = vld [vmem:[#allocation7 + $0x118] sm:$0xff]
    %v281 = vld [vmem:[#allocation7 + $0x120] sm:$0xff]
    %v282 = vld [vmem:[#allocation7 + $0x128] sm:$0xff]
    %v283 = vld [vmem:[#allocation7 + $0x130] sm:$0xff]
    %v284 = vld [vmem:[#allocation7 + $0x138] sm:$0xff]
    %v285 = vld [vmem:[#allocation7 + $0x140] sm:$0xff]
    %v286 = vld [vmem:[#allocation7 + $0x148] sm:$0xff]
    %v287 = vld [vmem:[#allocation7 + $0x150] sm:$0xff]
    %v288 = vld [vmem:[#allocation7 + $0x158] sm:$0xff]
    %v289 = vld [vmem:[#allocation7 + $0x160] sm:$0xff]
    %v290 = vld [vmem:[#allocation7 + $0x168] sm:$0xff]
    %v291 = vld [vmem:[#allocation7 + $0x170] sm:$0xff]
    %v292 = vld [vmem:[#allocation7 + $0x178] sm:$0xff]
    %v293 = vld [vmem:[#allocation7 + $0x180] sm:$0xff]
    %v294 = vld [vmem:[#allocation7 + $0x188] sm:$0xff]
    %v295 = vld [vmem:[#allocation7 + $0x190] sm:$0xff]
    %v296 = vld [vmem:[#allocation7 + $0x198] sm:$0xff]
    %v297 = vld [vmem:[#allocation7 + $0x1a0] sm:$0xff]
    %v298 = vld [vmem:[#allocation7 + $0x1a8] sm:$0xff]
    %v299 = vld [vmem:[#allocation7 + $0x1b0] sm:$0xff]
    %v300 = vld [vmem:[#allocation7 + $0x1b8] sm:$0xff]
    %v301 = vld [vmem:[#allocation7 + $0x1c0] sm:$0xff]
    %v302 = vld [vmem:[#allocation7 + $0x1c8] sm:$0xff]
    %v303 = vld [vmem:[#allocation7 + $0x1d0] sm:$0xff]
    %v304 = vld [vmem:[#allocation7 + $0x1d8] sm:$0xff]
    %v305 = vld [vmem:[#allocation7 + $0x1e0] sm:$0xff]
    %v306 = vld [vmem:[#allocation7 + $0x1e8] sm:$0xff]
    %v307 = vld [vmem:[#allocation7 + $0x1f0] sm:$0xff]
    %v308 = vld [vmem:[#allocation7 + $0x1f8] sm:$0xff]
    %v309 = vld [vmem:[%s5 + $0x2] sm:$0xf]
    %v311 = vlaneseq
    %v312 = vshrl.u32 %v311, 7
    %v313 = vsub.s32 0, %v312
    %v314 = vrot.slane %v309, %v313
    %v315 = vlaneseq
    %v316 = vshrl.u32 %v315, 7
    %v317 = vsub.s32 1, %v316
    %v318 = vrot.slane %v309, %v317
    %v319 = vlaneseq
    %v320 = vshrl.u32 %v319, 7
    %v321 = vsub.s32 2, %v320
    %v322 = vrot.slane %v309, %v321
    %v323 = vlaneseq
    %v324 = vshrl.u32 %v323, 7
    %v325 = vsub.s32 3, %v324
    %v326 = vrot.slane %v309, %v325
    %v395 = vunpack.c.l.b16 %v245
    %v396 = vunpack.c.h.b16 %v245
    %v397 = vunpack.c.l.b16 %v246
    %v398 = vunpack.c.h.b16 %v246
    %v399 = vunpack.c.l.b16 %v247
    %v400 = vunpack.c.h.b16 %v247
    %v401 = vunpack.c.l.b16 %v248
    %v402 = vunpack.c.h.b16 %v248
    %v403 = vunpack.c.l.b16 %v249
    %v404 = vunpack.c.h.b16 %v249
    %v405 = vunpack.c.l.b16 %v250
    %v406 = vunpack.c.h.b16 %v250
    %v407 = vunpack.c.l.b16 %v251
    %v408 = vunpack.c.h.b16 %v251
    %v409 = vunpack.c.l.b16 %v252
    %v410 = vunpack.c.h.b16 %v252
    %v411 = vunpack.c.l.b16 %v253
    %v412 = vunpack.c.h.b16 %v253
    %v413 = vunpack.c.l.b16 %v254
    %v414 = vunpack.c.h.b16 %v254
    %v415 = vunpack.c.l.b16 %v255
    %v416 = vunpack.c.h.b16 %v255
    %v417 = vunpack.c.l.b16 %v256
    %v418 = vunpack.c.h.b16 %v256
    %v419 = vunpack.c.l.b16 %v257
    %v420 = vunpack.c.h.b16 %v257
    %v421 = vunpack.c.l.b16 %v258
    %v422 = vunpack.c.h.b16 %v258
    %v423 = vunpack.c.l.b16 %v259
    %v424 = vunpack.c.h.b16 %v259
    %v425 = vunpack.c.l.b16 %v260
    %v426 = vunpack.c.h.b16 %v260
    %v427 = vunpack.c.l.b16 %v261
    %v428 = vunpack.c.h.b16 %v261
    %v429 = vunpack.c.l.b16 %v262
    %v430 = vunpack.c.h.b16 %v262
    %v431 = vunpack.c.l.b16 %v263
    %v432 = vunpack.c.h.b16 %v263
    %v433 = vunpack.c.l.b16 %v264
    %v434 = vunpack.c.h.b16 %v264
    %v435 = vunpack.c.l.b16 %v265
    %v436 = vunpack.c.h.b16 %v265
    %v437 = vunpack.c.l.b16 %v266
    %v438 = vunpack.c.h.b16 %v266
    %v439 = vunpack.c.l.b16 %v267
    %v440 = vunpack.c.h.b16 %v267
    %v441 = vunpack.c.l.b16 %v268
    %v442 = vunpack.c.h.b16 %v268
    %v443 = vunpack.c.l.b16 %v269
    %v444 = vunpack.c.h.b16 %v269
    %v445 = vunpack.c.l.b16 %v270
    %v446 = vunpack.c.h.b16 %v270
    %v447 = vunpack.c.l.b16 %v271
    %v448 = vunpack.c.h.b16 %v271
    %v449 = vunpack.c.l.b16 %v272
    %v450 = vunpack.c.h.b16 %v272
    %v451 = vunpack.c.l.b16 %v273
    %v452 = vunpack.c.h.b16 %v273
    %v453 = vunpack.c.l.b16 %v274
    %v454 = vunpack.c.h.b16 %v274
    %v455 = vunpack.c.l.b16 %v275
    %v456 = vunpack.c.h.b16 %v275
    %v457 = vunpack.c.l.b16 %v276
    %v458 = vunpack.c.h.b16 %v276
    %v459 = vunpack.c.l.b16 %v277
    %v460 = vunpack.c.h.b16 %v277
    %v461 = vunpack.c.l.b16 %v278
    %v462 = vunpack.c.h.b16 %v278
    %v463 = vunpack.c.l.b16 %v279
    %v464 = vunpack.c.h.b16 %v279
    %v465 = vunpack.c.l.b16 %v280
    %v466 = vunpack.c.h.b16 %v280
    %v467 = vunpack.c.l.b16 %v281
    %v468 = vunpack.c.h.b16 %v281
    %v469 = vunpack.c.l.b16 %v282
    %v470 = vunpack.c.h.b16 %v282
    %v471 = vunpack.c.l.b16 %v283
    %v472 = vunpack.c.h.b16 %v283
    %v473 = vunpack.c.l.b16 %v284
    %v474 = vunpack.c.h.b16 %v284
    %v475 = vunpack.c.l.b16 %v285
    %v476 = vunpack.c.h.b16 %v285
    %v477 = vunpack.c.l.b16 %v286
    %v478 = vunpack.c.h.b16 %v286
    %v479 = vunpack.c.l.b16 %v287
    %v480 = vunpack.c.h.b16 %v287
    %v481 = vunpack.c.l.b16 %v288
    %v482 = vunpack.c.h.b16 %v288
    %v483 = vunpack.c.l.b16 %v289
    %v484 = vunpack.c.h.b16 %v289
    %v485 = vunpack.c.l.b16 %v290
    %v486 = vunpack.c.h.b16 %v290
    %v487 = vunpack.c.l.b16 %v291
    %v488 = vunpack.c.h.b16 %v291
    %v489 = vunpack.c.l.b16 %v292
    %v490 = vunpack.c.h.b16 %v292
    %v491 = vunpack.c.l.b16 %v293
    %v492 = vunpack.c.h.b16 %v293
    %v493 = vunpack.c.l.b16 %v294
    %v494 = vunpack.c.h.b16 %v294
    %v495 = vunpack.c.l.b16 %v295
    %v496 = vunpack.c.h.b16 %v295
    %v497 = vunpack.c.l.b16 %v296
    %v498 = vunpack.c.h.b16 %v296
    %v499 = vunpack.c.l.b16 %v297
    %v500 = vunpack.c.h.b16 %v297
    %v501 = vunpack.c.l.b16 %v298
    %v502 = vunpack.c.h.b16 %v298
    %v503 = vunpack.c.l.b16 %v299
    %v504 = vunpack.c.h.b16 %v299
    %v505 = vunpack.c.l.b16 %v300
    %v506 = vunpack.c.h.b16 %v300
    %v507 = vunpack.c.l.b16 %v301
    %v508 = vunpack.c.h.b16 %v301
    %v509 = vunpack.c.l.b16 %v302
    %v510 = vunpack.c.h.b16 %v302
    %v511 = vunpack.c.l.b16 %v303
    %v512 = vunpack.c.h.b16 %v303
    %v513 = vunpack.c.l.b16 %v304
    %v514 = vunpack.c.h.b16 %v304
    %v515 = vunpack.c.l.b16 %v305
    %v516 = vunpack.c.h.b16 %v305
    %v517 = vunpack.c.l.b16 %v306
    %v518 = vunpack.c.h.b16 %v306
    %v519 = vunpack.c.l.b16 %v307
    %v520 = vunpack.c.h.b16 %v307
    %v521 = vunpack.c.l.b16 %v308
    %v522 = vunpack.c.h.b16 %v308
    %v523 = vpack.c.b16 %v399, %v395
    %v524 = vpack.c.b16 %v400, %v396
    %v525 = vpack.c.b16 %v401, %v397
    %v526 = vpack.c.b16 %v402, %v398
    %v527 = vpack.c.b16 %v407, %v403
    %v528 = vpack.c.b16 %v408, %v404
    %v529 = vpack.c.b16 %v409, %v405
    %v530 = vpack.c.b16 %v410, %v406
    %v531 = vpack.c.b16 %v415, %v411
    %v532 = vpack.c.b16 %v416, %v412
    %v533 = vpack.c.b16 %v417, %v413
    %v534 = vpack.c.b16 %v418, %v414
    %v535 = vpack.c.b16 %v423, %v419
    %v536 = vpack.c.b16 %v424, %v420
    %v537 = vpack.c.b16 %v425, %v421
    %v538 = vpack.c.b16 %v426, %v422
    %v539 = vpack.c.b16 %v431, %v427
    %v540 = vpack.c.b16 %v432, %v428
    %v541 = vpack.c.b16 %v433, %v429
    %v542 = vpack.c.b16 %v434, %v430
    %v543 = vpack.c.b16 %v439, %v435
    %v544 = vpack.c.b16 %v440, %v436
    %v545 = vpack.c.b16 %v441, %v437
    %v546 = vpack.c.b16 %v442, %v438
    %v547 = vpack.c.b16 %v447, %v443
    %v548 = vpack.c.b16 %v448, %v444
    %v549 = vpack.c.b16 %v449, %v445
    %v550 = vpack.c.b16 %v450, %v446
    %v551 = vpack.c.b16 %v455, %v451
    %v552 = vpack.c.b16 %v456, %v452
    %v553 = vpack.c.b16 %v457, %v453
    %v554 = vpack.c.b16 %v458, %v454
    %v555 = vpack.c.b16 %v463, %v459
    %v556 = vpack.c.b16 %v464, %v460
    %v557 = vpack.c.b16 %v465, %v461
    %v558 = vpack.c.b16 %v466, %v462
    %v559 = vpack.c.b16 %v471, %v467
    %v560 = vpack.c.b16 %v472, %v468
    %v561 = vpack.c.b16 %v473, %v469
    %v562 = vpack.c.b16 %v474, %v470
    %v563 = vpack.c.b16 %v479, %v475
    %v564 = vpack.c.b16 %v480, %v476
    %v565 = vpack.c.b16 %v481, %v477
    %v566 = vpack.c.b16 %v482, %v478
    %v567 = vpack.c.b16 %v487, %v483
    %v568 = vpack.c.b16 %v488, %v484
    %v569 = vpack.c.b16 %v489, %v485
    %v570 = vpack.c.b16 %v490, %v486
    %v571 = vpack.c.b16 %v495, %v491
    %v572 = vpack.c.b16 %v496, %v492
    %v573 = vpack.c.b16 %v497, %v493
    %v574 = vpack.c.b16 %v498, %v494
    %v575 = vpack.c.b16 %v503, %v499
    %v576 = vpack.c.b16 %v504, %v500
    %v577 = vpack.c.b16 %v505, %v501
    %v578 = vpack.c.b16 %v506, %v502
    %v579 = vpack.c.b16 %v511, %v507
    %v580 = vpack.c.b16 %v512, %v508
    %v581 = vpack.c.b16 %v513, %v509
    %v582 = vpack.c.b16 %v514, %v510
    %v583 = vpack.c.b16 %v519, %v515
    %v584 = vpack.c.b16 %v520, %v516
    %v585 = vpack.c.b16 %v521, %v517
    %v586 = vpack.c.b16 %v522, %v518
    %651 = vmatprep.subr.bf16.mxu0 %v524
    %652 = vmatpush1.bf16.msra.mxu0 %v523
    %653 = vmatprep.subr.bf16.mxu0 %v528
    %654 = vmatpush1.bf16.msra.mxu0 %v527
    %655 = vmatprep.subr.bf16.mxu0 %v532
    %656 = vmatpush1.bf16.msra.mxu0 %v531
    %657 = vmatprep.subr.bf16.mxu0 %v536
    %658 = vmatpush1.bf16.msra.mxu0 %v535
    %659 = vmatprep.subr.bf16.mxu0 %v540
    %660 = vmatpush1.bf16.msra.mxu0 %v539
    %661 = vmatprep.subr.bf16.mxu0 %v544
    %662 = vmatpush1.bf16.msra.mxu0 %v543
    %663 = vmatprep.subr.bf16.mxu0 %v548
    %664 = vmatpush1.bf16.msra.mxu0 %v547
    %665 = vmatprep.subr.bf16.mxu0 %v552
    %666 = vmatpush1.bf16.msra.mxu0 %v551
    %667 = vmatprep.subr.bf16.mxu0 %v556
    %668 = vmatpush1.bf16.msra.mxu0 %v555
    %669 = vmatprep.subr.bf16.mxu0 %v560
    %670 = vmatpush1.bf16.msra.mxu0 %v559
    %671 = vmatprep.subr.bf16.mxu0 %v564
    %672 = vmatpush1.bf16.msra.mxu0 %v563
    %673 = vmatprep.subr.bf16.mxu0 %v568
    %674 = vmatpush1.bf16.msra.mxu0 %v567
    %675 = vmatprep.subr.bf16.mxu0 %v572
    %676 = vmatpush1.bf16.msra.mxu0 %v571
    %677 = vmatprep.subr.bf16.mxu0 %v576
    %678 = vmatpush1.bf16.msra.mxu0 %v575
    %679 = vmatprep.subr.bf16.mxu0 %v580
    %680 = vmatpush1.bf16.msra.mxu0 %v579
    %681 = vmatprep.subr.bf16.mxu0 %v584
    %682 = vmatpush1.bf16.msra.mxu0 %v583
    %683 = vmatprep.mubr.bf16.mxu0 %v244
    %684 = vmatmul.mubr.bf16.gmra.mrb[0].mxu0 %v243
    %v685 = vpop.f32.mrb[0].mxu0
    %v686 = vadd.f32 %v314, %v685
    %v687 = vpop.f32.mrb[0].mxu0
    %v688 = vadd.f32 %v318, %v687
    %v689 = vpop.f32.mrb[0].mxu0
    %v690 = vpop.f32.mrb[0].mxu0
    %691 = vdwg.mxu0
    %692 = vmatprep.subr.bf16.mxu0 %v526
    %693 = vmatpush1.bf16.msra.mxu0 %v525
    %694 = vmatprep.subr.bf16.mxu0 %v530
    %695 = vmatpush1.bf16.msra.mxu0 %v529
    %696 = vmatprep.subr.bf16.mxu0 %v534
    %697 = vmatpush1.bf16.msra.mxu0 %v533
    %698 = vmatprep.subr.bf16.mxu0 %v538
    %699 = vmatpush1.bf16.msra.mxu0 %v537
    %700 = vmatprep.subr.bf16.mxu0 %v542
    %701 = vmatpush1.bf16.msra.mxu0 %v541
    %702 = vmatprep.subr.bf16.mxu0 %v546
    %703 = vmatpush1.bf16.msra.mxu0 %v545
    %704 = vmatprep.subr.bf16.mxu0 %v550
    %705 = vmatpush1.bf16.msra.mxu0 %v549
    %706 = vmatprep.subr.bf16.mxu0 %v554
    %707 = vmatpush1.bf16.msra.mxu0 %v553
    %708 = vmatprep.subr.bf16.mxu0 %v558
    %709 = vmatpush1.bf16.msra.mxu0 %v557
    %710 = vmatprep.subr.bf16.mxu0 %v562
    %711 = vmatpush1.bf16.msra.mxu0 %v561
    %712 = vmatprep.subr.bf16.mxu0 %v566
    %713 = vmatpush1.bf16.msra.mxu0 %v565
    %714 = vmatprep.subr.bf16.mxu0 %v570
    %715 = vmatpush1.bf16.msra.mxu0 %v569
    %716 = vmatprep.subr.bf16.mxu0 %v574
    %717 = vmatpush1.bf16.msra.mxu0 %v573
    %718 = vmatprep.subr.bf16.mxu0 %v578
    %719 = vmatpush1.bf16.msra.mxu0 %v577
    %720 = vmatprep.subr.bf16.mxu0 %v582
    %721 = vmatpush1.bf16.msra.mxu0 %v581
    %722 = vmatprep.subr.bf16.mxu0 %v586
    %723 = vmatpush1.bf16.msra.mxu0 %v585
    %724 = vmatprep.mubr.bf16.mxu0 %v244
    %725 = vmatmul.mubr.bf16.gmra.mrb[0].mxu0 %v243
    %v726 = vpop.f32.mrb[0].mxu0
    %v727 = vadd.f32 %v322, %v726
    %v728 = vpop.f32.mrb[0].mxu0
    %v729 = vadd.f32 %v326, %v728
    %v730 = vpop.f32.mrb[0].mxu0
    %v731 = vpop.f32.mrb[0].mxu0
    %732 = vdwg.mxu0
    %v733 = vmax.f32 %v686, 0.0
    %v734 = vmax.f32 %v688, 0.0
    %v735 = vmax.f32 %v727, 0.0
    %v736 = vmax.f32 %v729, 0.0
    %v737 = vpack.c.bf16 %v733, %v733
    %v738 = vpack.c.bf16 %v734, %v734
    %v739 = vpack.c.bf16 %v735, %v735
    %v740 = vpack.c.bf16 %v736, %v736
    %v741 = vld [vmem:[#allocation8] sm:$0xff]
    %v742 = vld [vmem:[#allocation8 + $0x8] sm:$0xff]
    %v743 = vld [vmem:[#allocation8 + $0x10] sm:$0xff]
    %v744 = vld [vmem:[#allocation8 + $0x18] sm:$0xff]
    %v745 = vld [vmem:[#allocation8 + $0x20] sm:$0xff]
    %v746 = vld [vmem:[#allocation8 + $0x28] sm:$0xff]
    %v747 = vld [vmem:[#allocation8 + $0x30] sm:$0xff]
    %v748 = vld [vmem:[#allocation8 + $0x38] sm:$0xff]
    %v749 = vld [vmem:[#allocation8 + $0x40] sm:$0xff]
    %v750 = vld [vmem:[#allocation8 + $0x48] sm:$0xff]
    %v751 = vld [vmem:[#allocation8 + $0x50] sm:$0xff]
    %v752 = vld [vmem:[#allocation8 + $0x58] sm:$0xff]
    %v753 = vld [vmem:[#allocation8 + $0x60] sm:$0xff]
    %v754 = vld [vmem:[#allocation8 + $0x68] sm:$0xff]
    %v755 = vld [vmem:[#allocation8 + $0x70] sm:$0xff]
    %v756 = vld [vmem:[#allocation8 + $0x78] sm:$0xff]
    %v757 = vld [vmem:[#allocation8 + $0x80] sm:$0xff]
    %v758 = vld [vmem:[#allocation8 + $0x88] sm:$0xff]
    %v759 = vld [vmem:[#allocation8 + $0x90] sm:$0xff]
    %v760 = vld [vmem:[#allocation8 + $0x98] sm:$0xff]
    %v761 = vld [vmem:[#allocation8 + $0xa0] sm:$0xff]
    %v762 = vld [vmem:[#allocation8 + $0xa8] sm:$0xff]
    %v763 = vld [vmem:[#allocation8 + $0xb0] sm:$0xff]
    %v764 = vld [vmem:[#allocation8 + $0xb8] sm:$0xff]
    %v765 = vld [vmem:[#allocation8 + $0xc0] sm:$0xff]
    %v766 = vld [vmem:[#allocation8 + $0xc8] sm:$0xff]
    %v767 = vld [vmem:[#allocation8 + $0xd0] sm:$0xff]
    %v768 = vld [vmem:[#allocation8 + $0xd8] sm:$0xff]
    %v769 = vld [vmem:[#allocation8 + $0xe0] sm:$0xff]
    %v770 = vld [vmem:[#allocation8 + $0xe8] sm:$0xff]
    %v771 = vld [vmem:[#allocation8 + $0xf0] sm:$0xff]
    %v772 = vld [vmem:[#allocation8 + $0xf8] sm:$0xff]
    %v773 = vld [vmem:[#allocation8 + $0x100] sm:$0xff]
    %v774 = vld [vmem:[#allocation8 + $0x108] sm:$0xff]
    %v775 = vld [vmem:[#allocation8 + $0x110] sm:$0xff]
    %v776 = vld [vmem:[#allocation8 + $0x118] sm:$0xff]
    %v777 = vld [vmem:[#allocation8 + $0x120] sm:$0xff]
    %v778 = vld [vmem:[#allocation8 + $0x128] sm:$0xff]
    %v779 = vld [vmem:[#allocation8 + $0x130] sm:$0xff]
    %v780 = vld [vmem:[#allocation8 + $0x138] sm:$0xff]
    %v781 = vld [vmem:[#allocation8 + $0x140] sm:$0xff]
    %v782 = vld [vmem:[#allocation8 + $0x148] sm:$0xff]
    %v783 = vld [vmem:[#allocation8 + $0x150] sm:$0xff]
    %v784 = vld [vmem:[#allocation8 + $0x158] sm:$0xff]
    %v785 = vld [vmem:[#allocation8 + $0x160] sm:$0xff]
    %v786 = vld [vmem:[#allocation8 + $0x168] sm:$0xff]
    %v787 = vld [vmem:[#allocation8 + $0x170] sm:$0xff]
    %v788 = vld [vmem:[#allocation8 + $0x178] sm:$0xff]
    %v789 = vld [vmem:[#allocation8 + $0x180] sm:$0xff]
    %v790 = vld [vmem:[#allocation8 + $0x188] sm:$0xff]
    %v791 = vld [vmem:[#allocation8 + $0x190] sm:$0xff]
    %v792 = vld [vmem:[#allocation8 + $0x198] sm:$0xff]
    %v793 = vld [vmem:[#allocation8 + $0x1a0] sm:$0xff]
    %v794 = vld [vmem:[#allocation8 + $0x1a8] sm:$0xff]
    %v795 = vld [vmem:[#allocation8 + $0x1b0] sm:$0xff]
    %v796 = vld [vmem:[#allocation8 + $0x1b8] sm:$0xff]
    %v797 = vld [vmem:[#allocation8 + $0x1c0] sm:$0xff]
    %v798 = vld [vmem:[#allocation8 + $0x1c8] sm:$0xff]
    %v799 = vld [vmem:[#allocation8 + $0x1d0] sm:$0xff]
    %v800 = vld [vmem:[#allocation8 + $0x1d8] sm:$0xff]
    %v801 = vld [vmem:[#allocation8 + $0x1e0] sm:$0xff]
    %v802 = vld [vmem:[#allocation8 + $0x1e8] sm:$0xff]
    %v803 = vld [vmem:[#allocation8 + $0x1f0] sm:$0xff]
    %v804 = vld [vmem:[#allocation8 + $0x1f8] sm:$0xff]
    %v805 = vld [vmem:[#allocation8 + $0x200] sm:$0xff]
    %v806 = vld [vmem:[#allocation8 + $0x208] sm:$0xff]
    %v807 = vld [vmem:[#allocation8 + $0x210] sm:$0xff]
    %v808 = vld [vmem:[#allocation8 + $0x218] sm:$0xff]
    %v809 = vld [vmem:[#allocation8 + $0x220] sm:$0xff]
    %v810 = vld [vmem:[#allocation8 + $0x228] sm:$0xff]
    %v811 = vld [vmem:[#allocation8 + $0x230] sm:$0xff]
    %v812 = vld [vmem:[#allocation8 + $0x238] sm:$0xff]
    %v813 = vld [vmem:[#allocation8 + $0x240] sm:$0xff]
    %v814 = vld [vmem:[#allocation8 + $0x248] sm:$0xff]
    %v815 = vld [vmem:[#allocation8 + $0x250] sm:$0xff]
    %v816 = vld [vmem:[#allocation8 + $0x258] sm:$0xff]
    %v817 = vld [vmem:[#allocation8 + $0x260] sm:$0xff]
    %v818 = vld [vmem:[#allocation8 + $0x268] sm:$0xff]
    %v819 = vld [vmem:[#allocation8 + $0x270] sm:$0xff]
    %v820 = vld [vmem:[#allocation8 + $0x278] sm:$0xff]
    %v821 = vld [vmem:[#allocation8 + $0x280] sm:$0xff]
    %v822 = vld [vmem:[#allocation8 + $0x288] sm:$0xff]
    %v823 = vld [vmem:[#allocation8 + $0x290] sm:$0xff]
    %v824 = vld [vmem:[#allocation8 + $0x298] sm:$0xff]
    %v825 = vld [vmem:[#allocation8 + $0x2a0] sm:$0xff]
    %v826 = vld [vmem:[#allocation8 + $0x2a8] sm:$0xff]
    %v827 = vld [vmem:[#allocation8 + $0x2b0] sm:$0xff]
    %v828 = vld [vmem:[#allocation8 + $0x2b8] sm:$0xff]
    %v829 = vld [vmem:[#allocation8 + $0x2c0] sm:$0xff]
    %v830 = vld [vmem:[#allocation8 + $0x2c8] sm:$0xff]
    %v831 = vld [vmem:[#allocation8 + $0x2d0] sm:$0xff]
    %v832 = vld [vmem:[#allocation8 + $0x2d8] sm:$0xff]
    %v833 = vld [vmem:[#allocation8 + $0x2e0] sm:$0xff]
    %v834 = vld [vmem:[#allocation8 + $0x2e8] sm:$0xff]
    %v835 = vld [vmem:[#allocation8 + $0x2f0] sm:$0xff]
    %v836 = vld [vmem:[#allocation8 + $0x2f8] sm:$0xff]
    %v837 = vld [vmem:[#allocation8 + $0x300] sm:$0xff]
    %v838 = vld [vmem:[#allocation8 + $0x308] sm:$0xff]
    %v839 = vld [vmem:[#allocation8 + $0x310] sm:$0xff]
    %v840 = vld [vmem:[#allocation8 + $0x318] sm:$0xff]
    %v841 = vld [vmem:[#allocation8 + $0x320] sm:$0xff]
    %v842 = vld [vmem:[#allocation8 + $0x328] sm:$0xff]
    %v843 = vld [vmem:[#allocation8 + $0x330] sm:$0xff]
    %v844 = vld [vmem:[#allocation8 + $0x338] sm:$0xff]
    %v845 = vld [vmem:[#allocation8 + $0x340] sm:$0xff]
    %v846 = vld [vmem:[#allocation8 + $0x348] sm:$0xff]
    %v847 = vld [vmem:[#allocation8 + $0x350] sm:$0xff]
    %v848 = vld [vmem:[#allocation8 + $0x358] sm:$0xff]
    %v849 = vld [vmem:[#allocation8 + $0x360] sm:$0xff]
    %v850 = vld [vmem:[#allocation8 + $0x368] sm:$0xff]
    %v851 = vld [vmem:[#allocation8 + $0x370] sm:$0xff]
    %v852 = vld [vmem:[#allocation8 + $0x378] sm:$0xff]
    %v853 = vld [vmem:[#allocation8 + $0x380] sm:$0xff]
    %v854 = vld [vmem:[#allocation8 + $0x388] sm:$0xff]
    %v855 = vld [vmem:[#allocation8 + $0x390] sm:$0xff]
    %v856 = vld [vmem:[#allocation8 + $0x398] sm:$0xff]
    %v857 = vld [vmem:[#allocation8 + $0x3a0] sm:$0xff]
    %v858 = vld [vmem:[#allocation8 + $0x3a8] sm:$0xff]
    %v859 = vld [vmem:[#allocation8 + $0x3b0] sm:$0xff]
    %v860 = vld [vmem:[#allocation8 + $0x3b8] sm:$0xff]
    %v861 = vld [vmem:[#allocation8 + $0x3c0] sm:$0xff]
    %v862 = vld [vmem:[#allocation8 + $0x3c8] sm:$0xff]
    %v863 = vld [vmem:[#allocation8 + $0x3d0] sm:$0xff]
    %v864 = vld [vmem:[#allocation8 + $0x3d8] sm:$0xff]
    %v865 = vld [vmem:[#allocation8 + $0x3e0] sm:$0xff]
    %v866 = vld [vmem:[#allocation8 + $0x3e8] sm:$0xff]
    %v867 = vld [vmem:[#allocation8 + $0x3f0] sm:$0xff]
    %v868 = vld [vmem:[#allocation8 + $0x3f8] sm:$0xff]
    %v869 = vld [vmem:[#allocation8 + $0x400] sm:$0xff]
    %v870 = vld [vmem:[#allocation8 + $0x408] sm:$0xff]
    %v871 = vld [vmem:[#allocation8 + $0x410] sm:$0xff]
    %v872 = vld [vmem:[#allocation8 + $0x418] sm:$0xff]
    %v873 = vld [vmem:[#allocation8 + $0x420] sm:$0xff]
    %v874 = vld [vmem:[#allocation8 + $0x428] sm:$0xff]
    %v875 = vld [vmem:[#allocation8 + $0x430] sm:$0xff]
    %v876 = vld [vmem:[#allocation8 + $0x438] sm:$0xff]
    %v877 = vld [vmem:[#allocation8 + $0x440] sm:$0xff]
    %v878 = vld [vmem:[#allocation8 + $0x448] sm:$0xff]
    %v879 = vld [vmem:[#allocation8 + $0x450] sm:$0xff]
    %v880 = vld [vmem:[#allocation8 + $0x458] sm:$0xff]
    %v881 = vld [vmem:[#allocation8 + $0x460] sm:$0xff]
    %v882 = vld [vmem:[#allocation8 + $0x468] sm:$0xff]
    %v883 = vld [vmem:[#allocation8 + $0x470] sm:$0xff]
    %v884 = vld [vmem:[#allocation8 + $0x478] sm:$0xff]
    %v885 = vld [vmem:[#allocation8 + $0x480] sm:$0xff]
    %v886 = vld [vmem:[#allocation8 + $0x488] sm:$0xff]
    %v887 = vld [vmem:[#allocation8 + $0x490] sm:$0xff]
    %v888 = vld [vmem:[#allocation8 + $0x498] sm:$0xff]
    %v889 = vld [vmem:[#allocation8 + $0x4a0] sm:$0xff]
    %v890 = vld [vmem:[#allocation8 + $0x4a8] sm:$0xff]
    %v891 = vld [vmem:[#allocation8 + $0x4b0] sm:$0xff]
    %v892 = vld [vmem:[#allocation8 + $0x4b8] sm:$0xff]
    %v893 = vld [vmem:[#allocation8 + $0x4c0] sm:$0xff]
    %v894 = vld [vmem:[#allocation8 + $0x4c8] sm:$0xff]
    %v895 = vld [vmem:[#allocation8 + $0x4d0] sm:$0xff]
    %v896 = vld [vmem:[#allocation8 + $0x4d8] sm:$0xff]
    %v897 = vld [vmem:[#allocation8 + $0x4e0] sm:$0xff]
    %v898 = vld [vmem:[#allocation8 + $0x4e8] sm:$0xff]
    %v899 = vld [vmem:[#allocation8 + $0x4f0] sm:$0xff]
    %v900 = vld [vmem:[#allocation8 + $0x4f8] sm:$0xff]
    %v901 = vld [vmem:[#allocation8 + $0x500] sm:$0xff]
    %v902 = vld [vmem:[#allocation8 + $0x508] sm:$0xff]
    %v903 = vld [vmem:[#allocation8 + $0x510] sm:$0xff]
    %v904 = vld [vmem:[#allocation8 + $0x518] sm:$0xff]
    %v905 = vld [vmem:[#allocation8 + $0x520] sm:$0xff]
    %v906 = vld [vmem:[#allocation8 + $0x528] sm:$0xff]
    %v907 = vld [vmem:[#allocation8 + $0x530] sm:$0xff]
    %v908 = vld [vmem:[#allocation8 + $0x538] sm:$0xff]
    %v909 = vld [vmem:[#allocation8 + $0x540] sm:$0xff]
    %v910 = vld [vmem:[#allocation8 + $0x548] sm:$0xff]
    %v911 = vld [vmem:[#allocation8 + $0x550] sm:$0xff]
    %v912 = vld [vmem:[#allocation8 + $0x558] sm:$0xff]
    %v913 = vld [vmem:[#allocation8 + $0x560] sm:$0xff]
    %v914 = vld [vmem:[#allocation8 + $0x568] sm:$0xff]
    %v915 = vld [vmem:[#allocation8 + $0x570] sm:$0xff]
    %v916 = vld [vmem:[#allocation8 + $0x578] sm:$0xff]
    %v917 = vld [vmem:[#allocation8 + $0x580] sm:$0xff]
    %v918 = vld [vmem:[#allocation8 + $0x588] sm:$0xff]
    %v919 = vld [vmem:[#allocation8 + $0x590] sm:$0xff]
    %v920 = vld [vmem:[#allocation8 + $0x598] sm:$0xff]
    %v921 = vld [vmem:[#allocation8 + $0x5a0] sm:$0xff]
    %v922 = vld [vmem:[#allocation8 + $0x5a8] sm:$0xff]
    %v923 = vld [vmem:[#allocation8 + $0x5b0] sm:$0xff]
    %v924 = vld [vmem:[#allocation8 + $0x5b8] sm:$0xff]
    %v925 = vld [vmem:[#allocation8 + $0x5c0] sm:$0xff]
    %v926 = vld [vmem:[#allocation8 + $0x5c8] sm:$0xff]
    %v927 = vld [vmem:[#allocation8 + $0x5d0] sm:$0xff]
    %v928 = vld [vmem:[#allocation8 + $0x5d8] sm:$0xff]
    %v929 = vld [vmem:[#allocation8 + $0x5e0] sm:$0xff]
    %v930 = vld [vmem:[#allocation8 + $0x5e8] sm:$0xff]
    %v931 = vld [vmem:[#allocation8 + $0x5f0] sm:$0xff]
    %v932 = vld [vmem:[#allocation8 + $0x5f8] sm:$0xff]
    %v933 = vld [vmem:[#allocation8 + $0x600] sm:$0xff]
    %v934 = vld [vmem:[#allocation8 + $0x608] sm:$0xff]
    %v935 = vld [vmem:[#allocation8 + $0x610] sm:$0xff]
    %v936 = vld [vmem:[#allocation8 + $0x618] sm:$0xff]
    %v937 = vld [vmem:[#allocation8 + $0x620] sm:$0xff]
    %v938 = vld [vmem:[#allocation8 + $0x628] sm:$0xff]
    %v939 = vld [vmem:[#allocation8 + $0x630] sm:$0xff]
    %v940 = vld [vmem:[#allocation8 + $0x638] sm:$0xff]
    %v941 = vld [vmem:[#allocation8 + $0x640] sm:$0xff]
    %v942 = vld [vmem:[#allocation8 + $0x648] sm:$0xff]
    %v943 = vld [vmem:[#allocation8 + $0x650] sm:$0xff]
    %v944 = vld [vmem:[#allocation8 + $0x658] sm:$0xff]
    %v945 = vld [vmem:[#allocation8 + $0x660] sm:$0xff]
    %v946 = vld [vmem:[#allocation8 + $0x668] sm:$0xff]
    %v947 = vld [vmem:[#allocation8 + $0x670] sm:$0xff]
    %v948 = vld [vmem:[#allocation8 + $0x678] sm:$0xff]
    %v949 = vld [vmem:[#allocation8 + $0x680] sm:$0xff]
    %v950 = vld [vmem:[#allocation8 + $0x688] sm:$0xff]
    %v951 = vld [vmem:[#allocation8 + $0x690] sm:$0xff]
    %v952 = vld [vmem:[#allocation8 + $0x698] sm:$0xff]
    %v953 = vld [vmem:[#allocation8 + $0x6a0] sm:$0xff]
    %v954 = vld [vmem:[#allocation8 + $0x6a8] sm:$0xff]
    %v955 = vld [vmem:[#allocation8 + $0x6b0] sm:$0xff]
    %v956 = vld [vmem:[#allocation8 + $0x6b8] sm:$0xff]
    %v957 = vld [vmem:[#allocation8 + $0x6c0] sm:$0xff]
    %v958 = vld [vmem:[#allocation8 + $0x6c8] sm:$0xff]
    %v959 = vld [vmem:[#allocation8 + $0x6d0] sm:$0xff]
    %v960 = vld [vmem:[#allocation8 + $0x6d8] sm:$0xff]
    %v961 = vld [vmem:[#allocation8 + $0x6e0] sm:$0xff]
    %v962 = vld [vmem:[#allocation8 + $0x6e8] sm:$0xff]
    %v963 = vld [vmem:[#allocation8 + $0x6f0] sm:$0xff]
    %v964 = vld [vmem:[#allocation8 + $0x6f8] sm:$0xff]
    %v965 = vld [vmem:[#allocation8 + $0x700] sm:$0xff]
    %v966 = vld [vmem:[#allocation8 + $0x708] sm:$0xff]
    %v967 = vld [vmem:[#allocation8 + $0x710] sm:$0xff]
    %v968 = vld [vmem:[#allocation8 + $0x718] sm:$0xff]
    %v969 = vld [vmem:[#allocation8 + $0x720] sm:$0xff]
    %v970 = vld [vmem:[#allocation8 + $0x728] sm:$0xff]
    %v971 = vld [vmem:[#allocation8 + $0x730] sm:$0xff]
    %v972 = vld [vmem:[#allocation8 + $0x738] sm:$0xff]
    %v973 = vld [vmem:[#allocation8 + $0x740] sm:$0xff]
    %v974 = vld [vmem:[#allocation8 + $0x748] sm:$0xff]
    %v975 = vld [vmem:[#allocation8 + $0x750] sm:$0xff]
    %v976 = vld [vmem:[#allocation8 + $0x758] sm:$0xff]
    %v977 = vld [vmem:[#allocation8 + $0x760] sm:$0xff]
    %v978 = vld [vmem:[#allocation8 + $0x768] sm:$0xff]
    %v979 = vld [vmem:[#allocation8 + $0x770] sm:$0xff]
    %v980 = vld [vmem:[#allocation8 + $0x778] sm:$0xff]
    %v981 = vld [vmem:[#allocation8 + $0x780] sm:$0xff]
    %v982 = vld [vmem:[#allocation8 + $0x788] sm:$0xff]
    %v983 = vld [vmem:[#allocation8 + $0x790] sm:$0xff]
    %v984 = vld [vmem:[#allocation8 + $0x798] sm:$0xff]
    %v985 = vld [vmem:[#allocation8 + $0x7a0] sm:$0xff]
    %v986 = vld [vmem:[#allocation8 + $0x7a8] sm:$0xff]
    %v987 = vld [vmem:[#allocation8 + $0x7b0] sm:$0xff]
    %v988 = vld [vmem:[#allocation8 + $0x7b8] sm:$0xff]
    %v989 = vld [vmem:[#allocation8 + $0x7c0] sm:$0xff]
    %v990 = vld [vmem:[#allocation8 + $0x7c8] sm:$0xff]
    %v991 = vld [vmem:[#allocation8 + $0x7d0] sm:$0xff]
    %v992 = vld [vmem:[#allocation8 + $0x7d8] sm:$0xff]
    %v993 = vld [vmem:[#allocation8 + $0x7e0] sm:$0xff]
    %v994 = vld [vmem:[#allocation8 + $0x7e8] sm:$0xff]
    %v995 = vld [vmem:[#allocation8 + $0x7f0] sm:$0xff]
    %v996 = vld [vmem:[#allocation8 + $0x7f8] sm:$0xff]
    %v997 = vld [vmem:[%s5 + $0x6] sm:$0xff]
    %v999 = vlaneseq
    %v1000 = vshrl.u32 %v999, 7
    %v1001 = vsub.s32 0, %v1000
    %v1002 = vrot.slane %v997, %v1001
    %v1003 = vlaneseq
    %v1004 = vshrl.u32 %v1003, 7
    %v1005 = vsub.s32 1, %v1004
    %v1006 = vrot.slane %v997, %v1005
    %v1007 = vlaneseq
    %v1008 = vshrl.u32 %v1007, 7
    %v1009 = vsub.s32 2, %v1008
    %v1010 = vrot.slane %v997, %v1009
    %v1011 = vlaneseq
    %v1012 = vshrl.u32 %v1011, 7
    %v1013 = vsub.s32 3, %v1012
    %v1014 = vrot.slane %v997, %v1013
    %v1015 = vlaneseq
    %v1016 = vshrl.u32 %v1015, 7
    %v1017 = vsub.s32 4, %v1016
    %v1018 = vrot.slane %v997, %v1017
    %v1019 = vlaneseq
    %v1020 = vshrl.u32 %v1019, 7
    %v1021 = vsub.s32 5, %v1020
    %v1022 = vrot.slane %v997, %v1021
    %v1023 = vlaneseq
    %v1024 = vshrl.u32 %v1023, 7
    %v1025 = vsub.s32 6, %v1024
    %v1026 = vrot.slane %v997, %v1025
    %v1027 = vlaneseq
    %v1028 = vshrl.u32 %v1027, 7
    %v1029 = vsub.s32 7, %v1028
    %v1030 = vrot.slane %v997, %v1029
    %v1295 = vunpack.c.l.b16 %v741
    %v1296 = vunpack.c.h.b16 %v741
    %v1297 = vunpack.c.l.b16 %v742
    %v1298 = vunpack.c.h.b16 %v742
    %v1299 = vunpack.c.l.b16 %v743
    %v1300 = vunpack.c.h.b16 %v743
    %v1301 = vunpack.c.l.b16 %v744
    %v1302 = vunpack.c.h.b16 %v744
    %v1303 = vunpack.c.l.b16 %v745
    %v1304 = vunpack.c.h.b16 %v745
    %v1305 = vunpack.c.l.b16 %v746
    %v1306 = vunpack.c.h.b16 %v746
    %v1307 = vunpack.c.l.b16 %v747
    %v1308 = vunpack.c.h.b16 %v747
    %v1309 = vunpack.c.l.b16 %v748
    %v1310 = vunpack.c.h.b16 %v748
    %v1311 = vunpack.c.l.b16 %v749
    %v1312 = vunpack.c.h.b16 %v749
    %v1313 = vunpack.c.l.b16 %v750
    %v1314 = vunpack.c.h.b16 %v750
    %v1315 = vunpack.c.l.b16 %v751
    %v1316 = vunpack.c.h.b16 %v751
    %v1317 = vunpack.c.l.b16 %v752
    %v1318 = vunpack.c.h.b16 %v752
    %v1319 = vunpack.c.l.b16 %v753
    %v1320 = vunpack.c.h.b16 %v753
    %v1321 = vunpack.c.l.b16 %v754
    %v1322 = vunpack.c.h.b16 %v754
    %v1323 = vunpack.c.l.b16 %v755
    %v1324 = vunpack.c.h.b16 %v755
    %v1325 = vunpack.c.l.b16 %v756
    %v1326 = vunpack.c.h.b16 %v756
    %v1327 = vunpack.c.l.b16 %v757
    %v1328 = vunpack.c.h.b16 %v757
    %v1329 = vunpack.c.l.b16 %v758
    %v1330 = vunpack.c.h.b16 %v758
    %v1331 = vunpack.c.l.b16 %v759
    %v1332 = vunpack.c.h.b16 %v759
    %v1333 = vunpack.c.l.b16 %v760
    %v1334 = vunpack.c.h.b16 %v760
    %v1335 = vunpack.c.l.b16 %v761
    %v1336 = vunpack.c.h.b16 %v761
    %v1337 = vunpack.c.l.b16 %v762
    %v1338 = vunpack.c.h.b16 %v762
    %v1339 = vunpack.c.l.b16 %v763
    %v1340 = vunpack.c.h.b16 %v763
    %v1341 = vunpack.c.l.b16 %v764
    %v1342 = vunpack.c.h.b16 %v764
    %v1343 = vunpack.c.l.b16 %v765
    %v1344 = vunpack.c.h.b16 %v765
    %v1345 = vunpack.c.l.b16 %v766
    %v1346 = vunpack.c.h.b16 %v766
    %v1347 = vunpack.c.l.b16 %v767
    %v1348 = vunpack.c.h.b16 %v767
    %v1349 = vunpack.c.l.b16 %v768
    %v1350 = vunpack.c.h.b16 %v768
    %v1351 = vunpack.c.l.b16 %v769
    %v1352 = vunpack.c.h.b16 %v769
    %v1353 = vunpack.c.l.b16 %v770
    %v1354 = vunpack.c.h.b16 %v770
    %v1355 = vunpack.c.l.b16 %v771
    %v1356 = vunpack.c.h.b16 %v771
    %v1357 = vunpack.c.l.b16 %v772
    %v1358 = vunpack.c.h.b16 %v772
    %v1359 = vunpack.c.l.b16 %v773
    %v1360 = vunpack.c.h.b16 %v773
    %v1361 = vunpack.c.l.b16 %v774
    %v1362 = vunpack.c.h.b16 %v774
    %v1363 = vunpack.c.l.b16 %v775
    %v1364 = vunpack.c.h.b16 %v775
    %v1365 = vunpack.c.l.b16 %v776
    %v1366 = vunpack.c.h.b16 %v776
    %v1367 = vunpack.c.l.b16 %v777
    %v1368 = vunpack.c.h.b16 %v777
    %v1369 = vunpack.c.l.b16 %v778
    %v1370 = vunpack.c.h.b16 %v778
    %v1371 = vunpack.c.l.b16 %v779
    %v1372 = vunpack.c.h.b16 %v779
    %v1373 = vunpack.c.l.b16 %v780
    %v1374 = vunpack.c.h.b16 %v780
    %v1375 = vunpack.c.l.b16 %v781
    %v1376 = vunpack.c.h.b16 %v781
    %v1377 = vunpack.c.l.b16 %v782
    %v1378 = vunpack.c.h.b16 %v782
    %v1379 = vunpack.c.l.b16 %v783
    %v1380 = vunpack.c.h.b16 %v783
    %v1381 = vunpack.c.l.b16 %v784
    %v1382 = vunpack.c.h.b16 %v784
    %v1383 = vunpack.c.l.b16 %v785
    %v1384 = vunpack.c.h.b16 %v785
    %v1385 = vunpack.c.l.b16 %v786
    %v1386 = vunpack.c.h.b16 %v786
    %v1387 = vunpack.c.l.b16 %v787
    %v1388 = vunpack.c.h.b16 %v787
    %v1389 = vunpack.c.l.b16 %v788
    %v1390 = vunpack.c.h.b16 %v788
    %v1391 = vunpack.c.l.b16 %v789
    %v1392 = vunpack.c.h.b16 %v789
    %v1393 = vunpack.c.l.b16 %v790
    %v1394 = vunpack.c.h.b16 %v790
    %v1395 = vunpack.c.l.b16 %v791
    %v1396 = vunpack.c.h.b16 %v791
    %v1397 = vunpack.c.l.b16 %v792
    %v1398 = vunpack.c.h.b16 %v792
    %v1399 = vunpack.c.l.b16 %v793
    %v1400 = vunpack.c.h.b16 %v793
    %v1401 = vunpack.c.l.b16 %v794
    %v1402 = vunpack.c.h.b16 %v794
    %v1403 = vunpack.c.l.b16 %v795
    %v1404 = vunpack.c.h.b16 %v795
    %v1405 = vunpack.c.l.b16 %v796
    %v1406 = vunpack.c.h.b16 %v796
    %v1407 = vunpack.c.l.b16 %v797
    %v1408 = vunpack.c.h.b16 %v797
    %v1409 = vunpack.c.l.b16 %v798
    %v1410 = vunpack.c.h.b16 %v798
    %v1411 = vunpack.c.l.b16 %v799
    %v1412 = vunpack.c.h.b16 %v799
    %v1413 = vunpack.c.l.b16 %v800
    %v1414 = vunpack.c.h.b16 %v800
    %v1415 = vunpack.c.l.b16 %v801
    %v1416 = vunpack.c.h.b16 %v801
    %v1417 = vunpack.c.l.b16 %v802
    %v1418 = vunpack.c.h.b16 %v802
    %v1419 = vunpack.c.l.b16 %v803
    %v1420 = vunpack.c.h.b16 %v803
    %v1421 = vunpack.c.l.b16 %v804
    %v1422 = vunpack.c.h.b16 %v804
    %v1423 = vunpack.c.l.b16 %v805
    %v1424 = vunpack.c.h.b16 %v805
    %v1425 = vunpack.c.l.b16 %v806
    %v1426 = vunpack.c.h.b16 %v806
    %v1427 = vunpack.c.l.b16 %v807
    %v1428 = vunpack.c.h.b16 %v807
    %v1429 = vunpack.c.l.b16 %v808
    %v1430 = vunpack.c.h.b16 %v808
    %v1431 = vunpack.c.l.b16 %v809
    %v1432 = vunpack.c.h.b16 %v809
    %v1433 = vunpack.c.l.b16 %v810
    %v1434 = vunpack.c.h.b16 %v810
    %v1435 = vunpack.c.l.b16 %v811
    %v1436 = vunpack.c.h.b16 %v811
    %v1437 = vunpack.c.l.b16 %v812
    %v1438 = vunpack.c.h.b16 %v812
    %v1439 = vunpack.c.l.b16 %v813
    %v1440 = vunpack.c.h.b16 %v813
    %v1441 = vunpack.c.l.b16 %v814
    %v1442 = vunpack.c.h.b16 %v814
    %v1443 = vunpack.c.l.b16 %v815
    %v1444 = vunpack.c.h.b16 %v815
    %v1445 = vunpack.c.l.b16 %v816
    %v1446 = vunpack.c.h.b16 %v816
    %v1447 = vunpack.c.l.b16 %v817
    %v1448 = vunpack.c.h.b16 %v817
    %v1449 = vunpack.c.l.b16 %v818
    %v1450 = vunpack.c.h.b16 %v818
    %v1451 = vunpack.c.l.b16 %v819
    %v1452 = vunpack.c.h.b16 %v819
    %v1453 = vunpack.c.l.b16 %v820
    %v1454 = vunpack.c.h.b16 %v820
    %v1455 = vunpack.c.l.b16 %v821
    %v1456 = vunpack.c.h.b16 %v821
    %v1457 = vunpack.c.l.b16 %v822
    %v1458 = vunpack.c.h.b16 %v822
    %v1459 = vunpack.c.l.b16 %v823
    %v1460 = vunpack.c.h.b16 %v823
    %v1461 = vunpack.c.l.b16 %v824
    %v1462 = vunpack.c.h.b16 %v824
    %v1463 = vunpack.c.l.b16 %v825
    %v1464 = vunpack.c.h.b16 %v825
    %v1465 = vunpack.c.l.b16 %v826
    %v1466 = vunpack.c.h.b16 %v826
    %v1467 = vunpack.c.l.b16 %v827
    %v1468 = vunpack.c.h.b16 %v827
    %v1469 = vunpack.c.l.b16 %v828
    %v1470 = vunpack.c.h.b16 %v828
    %v1471 = vunpack.c.l.b16 %v829
    %v1472 = vunpack.c.h.b16 %v829
    %v1473 = vunpack.c.l.b16 %v830
    %v1474 = vunpack.c.h.b16 %v830
    %v1475 = vunpack.c.l.b16 %v831
    %v1476 = vunpack.c.h.b16 %v831
    %v1477 = vunpack.c.l.b16 %v832
    %v1478 = vunpack.c.h.b16 %v832
    %v1479 = vunpack.c.l.b16 %v833
    %v1480 = vunpack.c.h.b16 %v833
    %v1481 = vunpack.c.l.b16 %v834
    %v1482 = vunpack.c.h.b16 %v834
    %v1483 = vunpack.c.l.b16 %v835
    %v1484 = vunpack.c.h.b16 %v835
    %v1485 = vunpack.c.l.b16 %v836
    %v1486 = vunpack.c.h.b16 %v836
    %v1487 = vunpack.c.l.b16 %v837
    %v1488 = vunpack.c.h.b16 %v837
    %v1489 = vunpack.c.l.b16 %v838
    %v1490 = vunpack.c.h.b16 %v838
    %v1491 = vunpack.c.l.b16 %v839
    %v1492 = vunpack.c.h.b16 %v839
    %v1493 = vunpack.c.l.b16 %v840
    %v1494 = vunpack.c.h.b16 %v840
    %v1495 = vunpack.c.l.b16 %v841
    %v1496 = vunpack.c.h.b16 %v841
    %v1497 = vunpack.c.l.b16 %v842
    %v1498 = vunpack.c.h.b16 %v842
    %v1499 = vunpack.c.l.b16 %v843
    %v1500 = vunpack.c.h.b16 %v843
    %v1501 = vunpack.c.l.b16 %v844
    %v1502 = vunpack.c.h.b16 %v844
    %v1503 = vunpack.c.l.b16 %v845
    %v1504 = vunpack.c.h.b16 %v845
    %v1505 = vunpack.c.l.b16 %v846
    %v1506 = vunpack.c.h.b16 %v846
    %v1507 = vunpack.c.l.b16 %v847
    %v1508 = vunpack.c.h.b16 %v847
    %v1509 = vunpack.c.l.b16 %v848
    %v1510 = vunpack.c.h.b16 %v848
    %v1511 = vunpack.c.l.b16 %v849
    %v1512 = vunpack.c.h.b16 %v849
    %v1513 = vunpack.c.l.b16 %v850
    %v1514 = vunpack.c.h.b16 %v850
    %v1515 = vunpack.c.l.b16 %v851
    %v1516 = vunpack.c.h.b16 %v851
    %v1517 = vunpack.c.l.b16 %v852
    %v1518 = vunpack.c.h.b16 %v852
    %v1519 = vunpack.c.l.b16 %v853
    %v1520 = vunpack.c.h.b16 %v853
    %v1521 = vunpack.c.l.b16 %v854
    %v1522 = vunpack.c.h.b16 %v854
    %v1523 = vunpack.c.l.b16 %v855
    %v1524 = vunpack.c.h.b16 %v855
    %v1525 = vunpack.c.l.b16 %v856
    %v1526 = vunpack.c.h.b16 %v856
    %v1527 = vunpack.c.l.b16 %v857
    %v1528 = vunpack.c.h.b16 %v857
    %v1529 = vunpack.c.l.b16 %v858
    %v1530 = vunpack.c.h.b16 %v858
    %v1531 = vunpack.c.l.b16 %v859
    %v1532 = vunpack.c.h.b16 %v859
    %v1533 = vunpack.c.l.b16 %v860
    %v1534 = vunpack.c.h.b16 %v860
    %v1535 = vunpack.c.l.b16 %v861
    %v1536 = vunpack.c.h.b16 %v861
    %v1537 = vunpack.c.l.b16 %v862
    %v1538 = vunpack.c.h.b16 %v862
    %v1539 = vunpack.c.l.b16 %v863
    %v1540 = vunpack.c.h.b16 %v863
    %v1541 = vunpack.c.l.b16 %v864
    %v1542 = vunpack.c.h.b16 %v864
    %v1543 = vunpack.c.l.b16 %v865
    %v1544 = vunpack.c.h.b16 %v865
    %v1545 = vunpack.c.l.b16 %v866
    %v1546 = vunpack.c.h.b16 %v866
    %v1547 = vunpack.c.l.b16 %v867
    %v1548 = vunpack.c.h.b16 %v867
    %v1549 = vunpack.c.l.b16 %v868
    %v1550 = vunpack.c.h.b16 %v868
    %v1551 = vunpack.c.l.b16 %v869
    %v1552 = vunpack.c.h.b16 %v869
    %v1553 = vunpack.c.l.b16 %v870
    %v1554 = vunpack.c.h.b16 %v870
    %v1555 = vunpack.c.l.b16 %v871
    %v1556 = vunpack.c.h.b16 %v871
    %v1557 = vunpack.c.l.b16 %v872
    %v1558 = vunpack.c.h.b16 %v872
    %v1559 = vunpack.c.l.b16 %v873
    %v1560 = vunpack.c.h.b16 %v873
    %v1561 = vunpack.c.l.b16 %v874
    %v1562 = vunpack.c.h.b16 %v874
    %v1563 = vunpack.c.l.b16 %v875
    %v1564 = vunpack.c.h.b16 %v875
    %v1565 = vunpack.c.l.b16 %v876
    %v1566 = vunpack.c.h.b16 %v876
    %v1567 = vunpack.c.l.b16 %v877
    %v1568 = vunpack.c.h.b16 %v877
    %v1569 = vunpack.c.l.b16 %v878
    %v1570 = vunpack.c.h.b16 %v878
    %v1571 = vunpack.c.l.b16 %v879
    %v1572 = vunpack.c.h.b16 %v879
    %v1573 = vunpack.c.l.b16 %v880
    %v1574 = vunpack.c.h.b16 %v880
    %v1575 = vunpack.c.l.b16 %v881
    %v1576 = vunpack.c.h.b16 %v881
    %v1577 = vunpack.c.l.b16 %v882
    %v1578 = vunpack.c.h.b16 %v882
    %v1579 = vunpack.c.l.b16 %v883
    %v1580 = vunpack.c.h.b16 %v883
    %v1581 = vunpack.c.l.b16 %v884
    %v1582 = vunpack.c.h.b16 %v884
    %v1583 = vunpack.c.l.b16 %v885
    %v1584 = vunpack.c.h.b16 %v885
    %v1585 = vunpack.c.l.b16 %v886
    %v1586 = vunpack.c.h.b16 %v886
    %v1587 = vunpack.c.l.b16 %v887
    %v1588 = vunpack.c.h.b16 %v887
    %v1589 = vunpack.c.l.b16 %v888
    %v1590 = vunpack.c.h.b16 %v888
    %v1591 = vunpack.c.l.b16 %v889
    %v1592 = vunpack.c.h.b16 %v889
    %v1593 = vunpack.c.l.b16 %v890
    %v1594 = vunpack.c.h.b16 %v890
    %v1595 = vunpack.c.l.b16 %v891
    %v1596 = vunpack.c.h.b16 %v891
    %v1597 = vunpack.c.l.b16 %v892
    %v1598 = vunpack.c.h.b16 %v892
    %v1599 = vunpack.c.l.b16 %v893
    %v1600 = vunpack.c.h.b16 %v893
    %v1601 = vunpack.c.l.b16 %v894
    %v1602 = vunpack.c.h.b16 %v894
    %v1603 = vunpack.c.l.b16 %v895
    %v1604 = vunpack.c.h.b16 %v895
    %v1605 = vunpack.c.l.b16 %v896
    %v1606 = vunpack.c.h.b16 %v896
    %v1607 = vunpack.c.l.b16 %v897
    %v1608 = vunpack.c.h.b16 %v897
    %v1609 = vunpack.c.l.b16 %v898
    %v1610 = vunpack.c.h.b16 %v898
    %v1611 = vunpack.c.l.b16 %v899
    %v1612 = vunpack.c.h.b16 %v899
    %v1613 = vunpack.c.l.b16 %v900
    %v1614 = vunpack.c.h.b16 %v900
    %v1615 = vunpack.c.l.b16 %v901
    %v1616 = vunpack.c.h.b16 %v901
    %v1617 = vunpack.c.l.b16 %v902
    %v1618 = vunpack.c.h.b16 %v902
    %v1619 = vunpack.c.l.b16 %v903
    %v1620 = vunpack.c.h.b16 %v903
    %v1621 = vunpack.c.l.b16 %v904
    %v1622 = vunpack.c.h.b16 %v904
    %v1623 = vunpack.c.l.b16 %v905
    %v1624 = vunpack.c.h.b16 %v905
    %v1625 = vunpack.c.l.b16 %v906
    %v1626 = vunpack.c.h.b16 %v906
    %v1627 = vunpack.c.l.b16 %v907
    %v1628 = vunpack.c.h.b16 %v907
    %v1629 = vunpack.c.l.b16 %v908
    %v1630 = vunpack.c.h.b16 %v908
    %v1631 = vunpack.c.l.b16 %v909
    %v1632 = vunpack.c.h.b16 %v909
    %v1633 = vunpack.c.l.b16 %v910
    %v1634 = vunpack.c.h.b16 %v910
    %v1635 = vunpack.c.l.b16 %v911
    %v1636 = vunpack.c.h.b16 %v911
    %v1637 = vunpack.c.l.b16 %v912
    %v1638 = vunpack.c.h.b16 %v912
    %v1639 = vunpack.c.l.b16 %v913
    %v1640 = vunpack.c.h.b16 %v913
    %v1641 = vunpack.c.l.b16 %v914
    %v1642 = vunpack.c.h.b16 %v914
    %v1643 = vunpack.c.l.b16 %v915
    %v1644 = vunpack.c.h.b16 %v915
    %v1645 = vunpack.c.l.b16 %v916
    %v1646 = vunpack.c.h.b16 %v916
    %v1647 = vunpack.c.l.b16 %v917
    %v1648 = vunpack.c.h.b16 %v917
    %v1649 = vunpack.c.l.b16 %v918
    %v1650 = vunpack.c.h.b16 %v918
    %v1651 = vunpack.c.l.b16 %v919
    %v1652 = vunpack.c.h.b16 %v919
    %v1653 = vunpack.c.l.b16 %v920
    %v1654 = vunpack.c.h.b16 %v920
    %v1655 = vunpack.c.l.b16 %v921
    %v1656 = vunpack.c.h.b16 %v921
    %v1657 = vunpack.c.l.b16 %v922
    %v1658 = vunpack.c.h.b16 %v922
    %v1659 = vunpack.c.l.b16 %v923
    %v1660 = vunpack.c.h.b16 %v923
    %v1661 = vunpack.c.l.b16 %v924
    %v1662 = vunpack.c.h.b16 %v924
    %v1663 = vunpack.c.l.b16 %v925
    %v1664 = vunpack.c.h.b16 %v925
    %v1665 = vunpack.c.l.b16 %v926
    %v1666 = vunpack.c.h.b16 %v926
    %v1667 = vunpack.c.l.b16 %v927
    %v1668 = vunpack.c.h.b16 %v927
    %v1669 = vunpack.c.l.b16 %v928
    %v1670 = vunpack.c.h.b16 %v928
    %v1671 = vunpack.c.l.b16 %v929
    %v1672 = vunpack.c.h.b16 %v929
    %v1673 = vunpack.c.l.b16 %v930
    %v1674 = vunpack.c.h.b16 %v930
    %v1675 = vunpack.c.l.b16 %v931
    %v1676 = vunpack.c.h.b16 %v931
    %v1677 = vunpack.c.l.b16 %v932
    %v1678 = vunpack.c.h.b16 %v932
    %v1679 = vunpack.c.l.b16 %v933
    %v1680 = vunpack.c.h.b16 %v933
    %v1681 = vunpack.c.l.b16 %v934
    %v1682 = vunpack.c.h.b16 %v934
    %v1683 = vunpack.c.l.b16 %v935
    %v1684 = vunpack.c.h.b16 %v935
    %v1685 = vunpack.c.l.b16 %v936
    %v1686 = vunpack.c.h.b16 %v936
    %v1687 = vunpack.c.l.b16 %v937
    %v1688 = vunpack.c.h.b16 %v937
    %v1689 = vunpack.c.l.b16 %v938
    %v1690 = vunpack.c.h.b16 %v938
    %v1691 = vunpack.c.l.b16 %v939
    %v1692 = vunpack.c.h.b16 %v939
    %v1693 = vunpack.c.l.b16 %v940
    %v1694 = vunpack.c.h.b16 %v940
    %v1695 = vunpack.c.l.b16 %v941
    %v1696 = vunpack.c.h.b16 %v941
    %v1697 = vunpack.c.l.b16 %v942
    %v1698 = vunpack.c.h.b16 %v942
    %v1699 = vunpack.c.l.b16 %v943
    %v1700 = vunpack.c.h.b16 %v943
    %v1701 = vunpack.c.l.b16 %v944
    %v1702 = vunpack.c.h.b16 %v944
    %v1703 = vunpack.c.l.b16 %v945
    %v1704 = vunpack.c.h.b16 %v945
    %v1705 = vunpack.c.l.b16 %v946
    %v1706 = vunpack.c.h.b16 %v946
    %v1707 = vunpack.c.l.b16 %v947
    %v1708 = vunpack.c.h.b16 %v947
    %v1709 = vunpack.c.l.b16 %v948
    %v1710 = vunpack.c.h.b16 %v948
    %v1711 = vunpack.c.l.b16 %v949
    %v1712 = vunpack.c.h.b16 %v949
    %v1713 = vunpack.c.l.b16 %v950
    %v1714 = vunpack.c.h.b16 %v950
    %v1715 = vunpack.c.l.b16 %v951
    %v1716 = vunpack.c.h.b16 %v951
    %v1717 = vunpack.c.l.b16 %v952
    %v1718 = vunpack.c.h.b16 %v952
    %v1719 = vunpack.c.l.b16 %v953
    %v1720 = vunpack.c.h.b16 %v953
    %v1721 = vunpack.c.l.b16 %v954
    %v1722 = vunpack.c.h.b16 %v954
    %v1723 = vunpack.c.l.b16 %v955
    %v1724 = vunpack.c.h.b16 %v955
    %v1725 = vunpack.c.l.b16 %v956
    %v1726 = vunpack.c.h.b16 %v956
    %v1727 = vunpack.c.l.b16 %v957
    %v1728 = vunpack.c.h.b16 %v957
    %v1729 = vunpack.c.l.b16 %v958
    %v1730 = vunpack.c.h.b16 %v958
    %v1731 = vunpack.c.l.b16 %v959
    %v1732 = vunpack.c.h.b16 %v959
    %v1733 = vunpack.c.l.b16 %v960
    %v1734 = vunpack.c.h.b16 %v960
    %v1735 = vunpack.c.l.b16 %v961
    %v1736 = vunpack.c.h.b16 %v961
    %v1737 = vunpack.c.l.b16 %v962
    %v1738 = vunpack.c.h.b16 %v962
    %v1739 = vunpack.c.l.b16 %v963
    %v1740 = vunpack.c.h.b16 %v963
    %v1741 = vunpack.c.l.b16 %v964
    %v1742 = vunpack.c.h.b16 %v964
    %v1743 = vunpack.c.l.b16 %v965
    %v1744 = vunpack.c.h.b16 %v965
    %v1745 = vunpack.c.l.b16 %v966
    %v1746 = vunpack.c.h.b16 %v966
    %v1747 = vunpack.c.l.b16 %v967
    %v1748 = vunpack.c.h.b16 %v967
    %v1749 = vunpack.c.l.b16 %v968
    %v1750 = vunpack.c.h.b16 %v968
    %v1751 = vunpack.c.l.b16 %v969
    %v1752 = vunpack.c.h.b16 %v969
    %v1753 = vunpack.c.l.b16 %v970
    %v1754 = vunpack.c.h.b16 %v970
    %v1755 = vunpack.c.l.b16 %v971
    %v1756 = vunpack.c.h.b16 %v971
    %v1757 = vunpack.c.l.b16 %v972
    %v1758 = vunpack.c.h.b16 %v972
    %v1759 = vunpack.c.l.b16 %v973
    %v1760 = vunpack.c.h.b16 %v973
    %v1761 = vunpack.c.l.b16 %v974
    %v1762 = vunpack.c.h.b16 %v974
    %v1763 = vunpack.c.l.b16 %v975
    %v1764 = vunpack.c.h.b16 %v975
    %v1765 = vunpack.c.l.b16 %v976
    %v1766 = vunpack.c.h.b16 %v976
    %v1767 = vunpack.c.l.b16 %v977
    %v1768 = vunpack.c.h.b16 %v977
    %v1769 = vunpack.c.l.b16 %v978
    %v1770 = vunpack.c.h.b16 %v978
    %v1771 = vunpack.c.l.b16 %v979
    %v1772 = vunpack.c.h.b16 %v979
    %v1773 = vunpack.c.l.b16 %v980
    %v1774 = vunpack.c.h.b16 %v980
    %v1775 = vunpack.c.l.b16 %v981
    %v1776 = vunpack.c.h.b16 %v981
    %v1777 = vunpack.c.l.b16 %v982
    %v1778 = vunpack.c.h.b16 %v982
    %v1779 = vunpack.c.l.b16 %v983
    %v1780 = vunpack.c.h.b16 %v983
    %v1781 = vunpack.c.l.b16 %v984
    %v1782 = vunpack.c.h.b16 %v984
    %v1783 = vunpack.c.l.b16 %v985
    %v1784 = vunpack.c.h.b16 %v985
    %v1785 = vunpack.c.l.b16 %v986
    %v1786 = vunpack.c.h.b16 %v986
    %v1787 = vunpack.c.l.b16 %v987
    %v1788 = vunpack.c.h.b16 %v987
    %v1789 = vunpack.c.l.b16 %v988
    %v1790 = vunpack.c.h.b16 %v988
    %v1791 = vunpack.c.l.b16 %v989
    %v1792 = vunpack.c.h.b16 %v989
    %v1793 = vunpack.c.l.b16 %v990
    %v1794 = vunpack.c.h.b16 %v990
    %v1795 = vunpack.c.l.b16 %v991
    %v1796 = vunpack.c.h.b16 %v991
    %v1797 = vunpack.c.l.b16 %v992
    %v1798 = vunpack.c.h.b16 %v992
    %v1799 = vunpack.c.l.b16 %v993
    %v1800 = vunpack.c.h.b16 %v993
    %v1801 = vunpack.c.l.b16 %v994
    %v1802 = vunpack.c.h.b16 %v994
    %v1803 = vunpack.c.l.b16 %v995
    %v1804 = vunpack.c.h.b16 %v995
    %v1805 = vunpack.c.l.b16 %v996
    %v1806 = vunpack.c.h.b16 %v996
    %v1807 = vpack.c.b16 %v1303, %v1295
    %v1808 = vpack.c.b16 %v1304, %v1296
    %v1809 = vpack.c.b16 %v1305, %v1297
    %v1810 = vpack.c.b16 %v1306, %v1298
    %v1811 = vpack.c.b16 %v1307, %v1299
    %v1812 = vpack.c.b16 %v1308, %v1300
    %v1813 = vpack.c.b16 %v1309, %v1301
    %v1814 = vpack.c.b16 %v1310, %v1302
    %v1815 = vpack.c.b16 %v1319, %v1311
    %v1816 = vpack.c.b16 %v1320, %v1312
    %v1817 = vpack.c.b16 %v1321, %v1313
    %v1818 = vpack.c.b16 %v1322, %v1314
    %v1819 = vpack.c.b16 %v1323, %v1315
    %v1820 = vpack.c.b16 %v1324, %v1316
    %v1821 = vpack.c.b16 %v1325, %v1317
    %v1822 = vpack.c.b16 %v1326, %v1318
    %v1823 = vpack.c.b16 %v1335, %v1327
    %v1824 = vpack.c.b16 %v1336, %v1328
    %v1825 = vpack.c.b16 %v1337, %v1329
    %v1826 = vpack.c.b16 %v1338, %v1330
    %v1827 = vpack.c.b16 %v1339, %v1331
    %v1828 = vpack.c.b16 %v1340, %v1332
    %v1829 = vpack.c.b16 %v1341, %v1333
    %v1830 = vpack.c.b16 %v1342, %v1334
    %v1831 = vpack.c.b16 %v1351, %v1343
    %v1832 = vpack.c.b16 %v1352, %v1344
    %v1833 = vpack.c.b16 %v1353, %v1345
    %v1834 = vpack.c.b16 %v1354, %v1346
    %v1835 = vpack.c.b16 %v1355, %v1347
    %v1836 = vpack.c.b16 %v1356, %v1348
    %v1837 = vpack.c.b16 %v1357, %v1349
    %v1838 = vpack.c.b16 %v1358, %v1350
    %v1839 = vpack.c.b16 %v1367, %v1359
    %v1840 = vpack.c.b16 %v1368, %v1360
    %v1841 = vpack.c.b16 %v1369, %v1361
    %v1842 = vpack.c.b16 %v1370, %v1362
    %v1843 = vpack.c.b16 %v1371, %v1363
    %v1844 = vpack.c.b16 %v1372, %v1364
    %v1845 = vpack.c.b16 %v1373, %v1365
    %v1846 = vpack.c.b16 %v1374, %v1366
    %v1847 = vpack.c.b16 %v1383, %v1375
    %v1848 = vpack.c.b16 %v1384, %v1376
    %v1849 = vpack.c.b16 %v1385, %v1377
    %v1850 = vpack.c.b16 %v1386, %v1378
    %v1851 = vpack.c.b16 %v1387, %v1379
    %v1852 = vpack.c.b16 %v1388, %v1380
    %v1853 = vpack.c.b16 %v1389, %v1381
    %v1854 = vpack.c.b16 %v1390, %v1382
    %v1855 = vpack.c.b16 %v1399, %v1391
    %v1856 = vpack.c.b16 %v1400, %v1392
    %v1857 = vpack.c.b16 %v1401, %v1393
    %v1858 = vpack.c.b16 %v1402, %v1394
    %v1859 = vpack.c.b16 %v1403, %v1395
    %v1860 = vpack.c.b16 %v1404, %v1396
    %v1861 = vpack.c.b16 %v1405, %v1397
    %v1862 = vpack.c.b16 %v1406, %v1398
    %v1863 = vpack.c.b16 %v1415, %v1407
    %v1864 = vpack.c.b16 %v1416, %v1408
    %v1865 = vpack.c.b16 %v1417, %v1409
    %v1866 = vpack.c.b16 %v1418, %v1410
    %v1867 = vpack.c.b16 %v1419, %v1411
    %v1868 = vpack.c.b16 %v1420, %v1412
    %v1869 = vpack.c.b16 %v1421, %v1413
    %v1870 = vpack.c.b16 %v1422, %v1414
    %v1871 = vpack.c.b16 %v1431, %v1423
    %v1872 = vpack.c.b16 %v1432, %v1424
    %v1873 = vpack.c.b16 %v1433, %v1425
    %v1874 = vpack.c.b16 %v1434, %v1426
    %v1875 = vpack.c.b16 %v1435, %v1427
    %v1876 = vpack.c.b16 %v1436, %v1428
    %v1877 = vpack.c.b16 %v1437, %v1429
    %v1878 = vpack.c.b16 %v1438, %v1430
    %v1879 = vpack.c.b16 %v1447, %v1439
    %v1880 = vpack.c.b16 %v1448, %v1440
    %v1881 = vpack.c.b16 %v1449, %v1441
    %v1882 = vpack.c.b16 %v1450, %v1442
    %v1883 = vpack.c.b16 %v1451, %v1443
    %v1884 = vpack.c.b16 %v1452, %v1444
    %v1885 = vpack.c.b16 %v1453, %v1445
    %v1886 = vpack.c.b16 %v1454, %v1446
    %v1887 = vpack.c.b16 %v1463, %v1455
    %v1888 = vpack.c.b16 %v1464, %v1456
    %v1889 = vpack.c.b16 %v1465, %v1457
    %v1890 = vpack.c.b16 %v1466, %v1458
    %v1891 = vpack.c.b16 %v1467, %v1459
    %v1892 = vpack.c.b16 %v1468, %v1460
    %v1893 = vpack.c.b16 %v1469, %v1461
    %v1894 = vpack.c.b16 %v1470, %v1462
    %v1895 = vpack.c.b16 %v1479, %v1471
    %v1896 = vpack.c.b16 %v1480, %v1472
    %v1897 = vpack.c.b16 %v1481, %v1473
    %v1898 = vpack.c.b16 %v1482, %v1474
    %v1899 = vpack.c.b16 %v1483, %v1475
    %v1900 = vpack.c.b16 %v1484, %v1476
    %v1901 = vpack.c.b16 %v1485, %v1477
    %v1902 = vpack.c.b16 %v1486, %v1478
    %v1903 = vpack.c.b16 %v1495, %v1487
    %v1904 = vpack.c.b16 %v1496, %v1488
    %v1905 = vpack.c.b16 %v1497, %v1489
    %v1906 = vpack.c.b16 %v1498, %v1490
    %v1907 = vpack.c.b16 %v1499, %v1491
    %v1908 = vpack.c.b16 %v1500, %v1492
    %v1909 = vpack.c.b16 %v1501, %v1493
    %v1910 = vpack.c.b16 %v1502, %v1494
    %v1911 = vpack.c.b16 %v1511, %v1503
    %v1912 = vpack.c.b16 %v1512, %v1504
    %v1913 = vpack.c.b16 %v1513, %v1505
    %v1914 = vpack.c.b16 %v1514, %v1506
    %v1915 = vpack.c.b16 %v1515, %v1507
    %v1916 = vpack.c.b16 %v1516, %v1508
    %v1917 = vpack.c.b16 %v1517, %v1509
    %v1918 = vpack.c.b16 %v1518, %v1510
    %v1919 = vpack.c.b16 %v1527, %v1519
    %v1920 = vpack.c.b16 %v1528, %v1520
    %v1921 = vpack.c.b16 %v1529, %v1521
    %v1922 = vpack.c.b16 %v1530, %v1522
    %v1923 = vpack.c.b16 %v1531, %v1523
    %v1924 = vpack.c.b16 %v1532, %v1524
    %v1925 = vpack.c.b16 %v1533, %v1525
    %v1926 = vpack.c.b16 %v1534, %v1526
    %v1927 = vpack.c.b16 %v1543, %v1535
    %v1928 = vpack.c.b16 %v1544, %v1536
    %v1929 = vpack.c.b16 %v1545, %v1537
    %v1930 = vpack.c.b16 %v1546, %v1538
    %v1931 = vpack.c.b16 %v1547, %v1539
    %v1932 = vpack.c.b16 %v1548, %v1540
    %v1933 = vpack.c.b16 %v1549, %v1541
    %v1934 = vpack.c.b16 %v1550, %v1542
    %v1935 = vpack.c.b16 %v1559, %v1551
    %v1936 = vpack.c.b16 %v1560, %v1552
    %v1937 = vpack.c.b16 %v1561, %v1553
    %v1938 = vpack.c.b16 %v1562, %v1554
    %v1939 = vpack.c.b16 %v1563, %v1555
    %v1940 = vpack.c.b16 %v1564, %v1556
    %v1941 = vpack.c.b16 %v1565, %v1557
    %v1942 = vpack.c.b16 %v1566, %v1558
    %v1943 = vpack.c.b16 %v1575, %v1567
    %v1944 = vpack.c.b16 %v1576, %v1568
    %v1945 = vpack.c.b16 %v1577, %v1569
    %v1946 = vpack.c.b16 %v1578, %v1570
    %v1947 = vpack.c.b16 %v1579, %v1571
    %v1948 = vpack.c.b16 %v1580, %v1572
    %v1949 = vpack.c.b16 %v1581, %v1573
    %v1950 = vpack.c.b16 %v1582, %v1574
    %v1951 = vpack.c.b16 %v1591, %v1583
    %v1952 = vpack.c.b16 %v1592, %v1584
    %v1953 = vpack.c.b16 %v1593, %v1585
    %v1954 = vpack.c.b16 %v1594, %v1586
    %v1955 = vpack.c.b16 %v1595, %v1587
    %v1956 = vpack.c.b16 %v1596, %v1588
    %v1957 = vpack.c.b16 %v1597, %v1589
    %v1958 = vpack.c.b16 %v1598, %v1590
    %v1959 = vpack.c.b16 %v1607, %v1599
    %v1960 = vpack.c.b16 %v1608, %v1600
    %v1961 = vpack.c.b16 %v1609, %v1601
    %v1962 = vpack.c.b16 %v1610, %v1602
    %v1963 = vpack.c.b16 %v1611, %v1603
    %v1964 = vpack.c.b16 %v1612, %v1604
    %v1965 = vpack.c.b16 %v1613, %v1605
    %v1966 = vpack.c.b16 %v1614, %v1606
    %v1967 = vpack.c.b16 %v1623, %v1615
    %v1968 = vpack.c.b16 %v1624, %v1616
    %v1969 = vpack.c.b16 %v1625, %v1617
    %v1970 = vpack.c.b16 %v1626, %v1618
    %v1971 = vpack.c.b16 %v1627, %v1619
    %v1972 = vpack.c.b16 %v1628, %v1620
    %v1973 = vpack.c.b16 %v1629, %v1621
    %v1974 = vpack.c.b16 %v1630, %v1622
    %v1975 = vpack.c.b16 %v1639, %v1631
    %v1976 = vpack.c.b16 %v1640, %v1632
    %v1977 = vpack.c.b16 %v1641, %v1633
    %v1978 = vpack.c.b16 %v1642, %v1634
    %v1979 = vpack.c.b16 %v1643, %v1635
    %v1980 = vpack.c.b16 %v1644, %v1636
    %v1981 = vpack.c.b16 %v1645, %v1637
    %v1982 = vpack.c.b16 %v1646, %v1638
    %v1983 = vpack.c.b16 %v1655, %v1647
    %v1984 = vpack.c.b16 %v1656, %v1648
    %v1985 = vpack.c.b16 %v1657, %v1649
    %v1986 = vpack.c.b16 %v1658, %v1650
    %v1987 = vpack.c.b16 %v1659, %v1651
    %v1988 = vpack.c.b16 %v1660, %v1652
    %v1989 = vpack.c.b16 %v1661, %v1653
    %v1990 = vpack.c.b16 %v1662, %v1654
    %v1991 = vpack.c.b16 %v1671, %v1663
    %v1992 = vpack.c.b16 %v1672, %v1664
    %v1993 = vpack.c.b16 %v1673, %v1665
    %v1994 = vpack.c.b16 %v1674, %v1666
    %v1995 = vpack.c.b16 %v1675, %v1667
    %v1996 = vpack.c.b16 %v1676, %v1668
    %v1997 = vpack.c.b16 %v1677, %v1669
    %v1998 = vpack.c.b16 %v1678, %v1670
    %v1999 = vpack.c.b16 %v1687, %v1679
    %v2000 = vpack.c.b16 %v1688, %v1680
    %v2001 = vpack.c.b16 %v1689, %v1681
    %v2002 = vpack.c.b16 %v1690, %v1682
    %v2003 = vpack.c.b16 %v1691, %v1683
    %v2004 = vpack.c.b16 %v1692, %v1684
    %v2005 = vpack.c.b16 %v1693, %v1685
    %v2006 = vpack.c.b16 %v1694, %v1686
    %v2007 = vpack.c.b16 %v1703, %v1695
    %v2008 = vpack.c.b16 %v1704, %v1696
    %v2009 = vpack.c.b16 %v1705, %v1697
    %v2010 = vpack.c.b16 %v1706, %v1698
    %v2011 = vpack.c.b16 %v1707, %v1699
    %v2012 = vpack.c.b16 %v1708, %v1700
    %v2013 = vpack.c.b16 %v1709, %v1701
    %v2014 = vpack.c.b16 %v1710, %v1702
    %v2015 = vpack.c.b16 %v1719, %v1711
    %v2016 = vpack.c.b16 %v1720, %v1712
    %v2017 = vpack.c.b16 %v1721, %v1713
    %v2018 = vpack.c.b16 %v1722, %v1714
    %v2019 = vpack.c.b16 %v1723, %v1715
    %v2020 = vpack.c.b16 %v1724, %v1716
    %v2021 = vpack.c.b16 %v1725, %v1717
    %v2022 = vpack.c.b16 %v1726, %v1718
    %v2023 = vpack.c.b16 %v1735, %v1727
    %v2024 = vpack.c.b16 %v1736, %v1728
    %v2025 = vpack.c.b16 %v1737, %v1729
    %v2026 = vpack.c.b16 %v1738, %v1730
    %v2027 = vpack.c.b16 %v1739, %v1731
    %v2028 = vpack.c.b16 %v1740, %v1732
    %v2029 = vpack.c.b16 %v1741, %v1733
    %v2030 = vpack.c.b16 %v1742, %v1734
    %v2031 = vpack.c.b16 %v1751, %v1743
    %v2032 = vpack.c.b16 %v1752, %v1744
    %v2033 = vpack.c.b16 %v1753, %v1745
    %v2034 = vpack.c.b16 %v1754, %v1746
    %v2035 = vpack.c.b16 %v1755, %v1747
    %v2036 = vpack.c.b16 %v1756, %v1748
    %v2037 = vpack.c.b16 %v1757, %v1749
    %v2038 = vpack.c.b16 %v1758, %v1750
    %v2039 = vpack.c.b16 %v1767, %v1759
    %v2040 = vpack.c.b16 %v1768, %v1760
    %v2041 = vpack.c.b16 %v1769, %v1761
    %v2042 = vpack.c.b16 %v1770, %v1762
    %v2043 = vpack.c.b16 %v1771, %v1763
    %v2044 = vpack.c.b16 %v1772, %v1764
    %v2045 = vpack.c.b16 %v1773, %v1765
    %v2046 = vpack.c.b16 %v1774, %v1766
    %v2047 = vpack.c.b16 %v1783, %v1775
    %v2048 = vpack.c.b16 %v1784, %v1776
    %v2049 = vpack.c.b16 %v1785, %v1777
    %v2050 = vpack.c.b16 %v1786, %v1778
    %v2051 = vpack.c.b16 %v1787, %v1779
    %v2052 = vpack.c.b16 %v1788, %v1780
    %v2053 = vpack.c.b16 %v1789, %v1781
    %v2054 = vpack.c.b16 %v1790, %v1782
    %v2055 = vpack.c.b16 %v1799, %v1791
    %v2056 = vpack.c.b16 %v1800, %v1792
    %v2057 = vpack.c.b16 %v1801, %v1793
    %v2058 = vpack.c.b16 %v1802, %v1794
    %v2059 = vpack.c.b16 %v1803, %v1795
    %v2060 = vpack.c.b16 %v1804, %v1796
    %v2061 = vpack.c.b16 %v1805, %v1797
    %v2062 = vpack.c.b16 %v1806, %v1798
    %2319 = vmatprep.subr.bf16.mxu0 %v1808
    %2320 = vmatpush1.bf16.msra.mxu0 %v1807
    %2321 = vmatprep.subr.bf16.mxu0 %v1816
    %2322 = vmatpush1.bf16.msra.mxu0 %v1815
    %2323 = vmatprep.subr.bf16.mxu0 %v1824
    %2324 = vmatpush1.bf16.msra.mxu0 %v1823
    %2325 = vmatprep.subr.bf16.mxu0 %v1832
    %2326 = vmatpush1.bf16.msra.mxu0 %v1831
    %2327 = vmatprep.subr.bf16.mxu0 %v1840
    %2328 = vmatpush1.bf16.msra.mxu0 %v1839
    %2329 = vmatprep.subr.bf16.mxu0 %v1848
    %2330 = vmatpush1.bf16.msra.mxu0 %v1847
    %2331 = vmatprep.subr.bf16.mxu0 %v1856
    %2332 = vmatpush1.bf16.msra.mxu0 %v1855
    %2333 = vmatprep.subr.bf16.mxu0 %v1864
    %2334 = vmatpush1.bf16.msra.mxu0 %v1863
    %2335 = vmatprep.subr.bf16.mxu0 %v1872
    %2336 = vmatpush1.bf16.msra.mxu0 %v1871
    %2337 = vmatprep.subr.bf16.mxu0 %v1880
    %2338 = vmatpush1.bf16.msra.mxu0 %v1879
    %2339 = vmatprep.subr.bf16.mxu0 %v1888
    %2340 = vmatpush1.bf16.msra.mxu0 %v1887
    %2341 = vmatprep.subr.bf16.mxu0 %v1896
    %2342 = vmatpush1.bf16.msra.mxu0 %v1895
    %2343 = vmatprep.subr.bf16.mxu0 %v1904
    %2344 = vmatpush1.bf16.msra.mxu0 %v1903
    %2345 = vmatprep.subr.bf16.mxu0 %v1912
    %2346 = vmatpush1.bf16.msra.mxu0 %v1911
    %2347 = vmatprep.subr.bf16.mxu0 %v1920
    %2348 = vmatpush1.bf16.msra.mxu0 %v1919
    %2349 = vmatprep.subr.bf16.mxu0 %v1928
    %2350 = vmatpush1.bf16.msra.mxu0 %v1927
    %2351 = vmatprep.mubr.bf16.mxu0 %v738
    %2352 = vmatmul.mubr.bf16.gmra.mrb[0].mxu0 %v737
    %v2353 = vpop.f32.mrb[0].mxu0
    %v2354 = vadd.f32 %v1002, %v2353
    %v2355 = vpop.f32.mrb[0].mxu0
    %v2356 = vadd.f32 %v1006, %v2355
    %v2357 = vpop.f32.mrb[0].mxu0
    %v2358 = vpop.f32.mrb[0].mxu0
    %2359 = vdwg.mxu0
    %2360 = vmatprep.subr.bf16.mxu0 %v1936
    %2361 = vmatpush1.bf16.msra.mxu0 %v1935
    %2362 = vmatprep.subr.bf16.mxu0 %v1944
    %2363 = vmatpush1.bf16.msra.mxu0 %v1943
    %2364 = vmatprep.subr.bf16.mxu0 %v1952
    %2365 = vmatpush1.bf16.msra.mxu0 %v1951
    %2366 = vmatprep.subr.bf16.mxu0 %v1960
    %2367 = vmatpush1.bf16.msra.mxu0 %v1959
    %2368 = vmatprep.subr.bf16.mxu0 %v1968
    %2369 = vmatpush1.bf16.msra.mxu0 %v1967
    %2370 = vmatprep.subr.bf16.mxu0 %v1976
    %2371 = vmatpush1.bf16.msra.mxu0 %v1975
    %2372 = vmatprep.subr.bf16.mxu0 %v1984
    %2373 = vmatpush1.bf16.msra.mxu0 %v1983
    %2374 = vmatprep.subr.bf16.mxu0 %v1992
    %2375 = vmatpush1.bf16.msra.mxu0 %v1991
    %2376 = vmatprep.subr.bf16.mxu0 %v2000
    %2377 = vmatpush1.bf16.msra.mxu0 %v1999
    %2378 = vmatprep.subr.bf16.mxu0 %v2008
    %2379 = vmatpush1.bf16.msra.mxu0 %v2007
    %2380 = vmatprep.subr.bf16.mxu0 %v2016
    %2381 = vmatpush1.bf16.msra.mxu0 %v2015
    %2382 = vmatprep.subr.bf16.mxu0 %v2024
    %2383 = vmatpush1.bf16.msra.mxu0 %v2023
    %2384 = vmatprep.subr.bf16.mxu0 %v2032
    %2385 = vmatpush1.bf16.msra.mxu0 %v2031
    %2386 = vmatprep.subr.bf16.mxu0 %v2040
    %2387 = vmatpush1.bf16.msra.mxu0 %v2039
    %2388 = vmatprep.subr.bf16.mxu0 %v2048
    %2389 = vmatpush1.bf16.msra.mxu0 %v2047
    %2390 = vmatprep.subr.bf16.mxu0 %v2056
    %2391 = vmatpush1.bf16.msra.mxu0 %v2055
    %2392 = vmatprep.mubr.bf16.mxu0 %v740
    %2393 = vmatmul.mubr.bf16.gmra.mrb[0].mxu0 %v739
    %v2394 = vpop.f32.mrb[0].mxu0
    %v2395 = vadd.f32 %v2354, %v2394
    %v2396 = vpop.f32.mrb[0].mxu0
    %v2397 = vadd.f32 %v2356, %v2396
    %v2398 = vpop.f32.mrb[0].mxu0
    %v2399 = vpop.f32.mrb[0].mxu0
    %2400 = vdwg.mxu0
    %2401 = vmatprep.subr.bf16.mxu0 %v1810
    %2402 = vmatpush1.bf16.msra.mxu0 %v1809
    %2403 = vmatprep.subr.bf16.mxu0 %v1818
    %2404 = vmatpush1.bf16.msra.mxu0 %v1817
    %2405 = vmatprep.subr.bf16.mxu0 %v1826
    %2406 = vmatpush1.bf16.msra.mxu0 %v1825
    %2407 = vmatprep.subr.bf16.mxu0 %v1834
    %2408 = vmatpush1.bf16.msra.mxu0 %v1833
    %2409 = vmatprep.subr.bf16.mxu0 %v1842
    %2410 = vmatpush1.bf16.msra.mxu0 %v1841
    %2411 = vmatprep.subr.bf16.mxu0 %v1850
    %2412 = vmatpush1.bf16.msra.mxu0 %v1849
    %2413 = vmatprep.subr.bf16.mxu0 %v1858
    %2414 = vmatpush1.bf16.msra.mxu0 %v1857
    %2415 = vmatprep.subr.bf16.mxu0 %v1866
    %2416 = vmatpush1.bf16.msra.mxu0 %v1865
    %2417 = vmatprep.subr.bf16.mxu0 %v1874
    %2418 = vmatpush1.bf16.msra.mxu0 %v1873
    %2419 = vmatprep.subr.bf16.mxu0 %v1882
    %2420 = vmatpush1.bf16.msra.mxu0 %v1881
    %2421 = vmatprep.subr.bf16.mxu0 %v1890
    %2422 = vmatpush1.bf16.msra.mxu0 %v1889
    %2423 = vmatprep.subr.bf16.mxu0 %v1898
    %2424 = vmatpush1.bf16.msra.mxu0 %v1897
    %2425 = vmatprep.subr.bf16.mxu0 %v1906
    %2426 = vmatpush1.bf16.msra.mxu0 %v1905
    %2427 = vmatprep.subr.bf16.mxu0 %v1914
    %2428 = vmatpush1.bf16.msra.mxu0 %v1913
    %2429 = vmatprep.subr.bf16.mxu0 %v1922
    %2430 = vmatpush1.bf16.msra.mxu0 %v1921
    %2431 = vmatprep.subr.bf16.mxu0 %v1930
    %2432 = vmatpush1.bf16.msra.mxu0 %v1929
    %2433 = vmatprep.mubr.bf16.mxu0 %v738
    %2434 = vmatmul.mubr.bf16.gmra.mrb[0].mxu0 %v737
    %v2435 = vpop.f32.mrb[0].mxu0
    %v2436 = vadd.f32 %v1010, %v2435
    %v2437 = vpop.f32.mrb[0].mxu0
    %v2438 = vadd.f32 %v1014, %v2437
    %v2439 = vpop.f32.mrb[0].mxu0
    %v2440 = vpop.f32.mrb[0].mxu0
    %2441 = vdwg.mxu0
    %2442 = vmatprep.subr.bf16.mxu0 %v1938
    %2443 = vmatpush1.bf16.msra.mxu0 %v1937
    %2444 = vmatprep.subr.bf16.mxu0 %v1946
    %2445 = vmatpush1.bf16.msra.mxu0 %v1945
    %2446 = vmatprep.subr.bf16.mxu0 %v1954
    %2447 = vmatpush1.bf16.msra.mxu0 %v1953
    %2448 = vmatprep.subr.bf16.mxu0 %v1962
    %2449 = vmatpush1.bf16.msra.mxu0 %v1961
    %2450 = vmatprep.subr.bf16.mxu0 %v1970
    %2451 = vmatpush1.bf16.msra.mxu0 %v1969
    %2452 = vmatprep.subr.bf16.mxu0 %v1978
    %2453 = vmatpush1.bf16.msra.mxu0 %v1977
    %2454 = vmatprep.subr.bf16.mxu0 %v1986
    %2455 = vmatpush1.bf16.msra.mxu0 %v1985
    %2456 = vmatprep.subr.bf16.mxu0 %v1994
    %2457 = vmatpush1.bf16.msra.mxu0 %v1993
    %2458 = vmatprep.subr.bf16.mxu0 %v2002
    %2459 = vmatpush1.bf16.msra.mxu0 %v2001
    %2460 = vmatprep.subr.bf16.mxu0 %v2010
    %2461 = vmatpush1.bf16.msra.mxu0 %v2009
    %2462 = vmatprep.subr.bf16.mxu0 %v2018
    %2463 = vmatpush1.bf16.msra.mxu0 %v2017
    %2464 = vmatprep.subr.bf16.mxu0 %v2026
    %2465 = vmatpush1.bf16.msra.mxu0 %v2025
    %2466 = vmatprep.subr.bf16.mxu0 %v2034
    %2467 = vmatpush1.bf16.msra.mxu0 %v2033
    %2468 = vmatprep.subr.bf16.mxu0 %v2042
    %2469 = vmatpush1.bf16.msra.mxu0 %v2041
    %2470 = vmatprep.subr.bf16.mxu0 %v2050
    %2471 = vmatpush1.bf16.msra.mxu0 %v2049
    %2472 = vmatprep.subr.bf16.mxu0 %v2058
    %2473 = vmatpush1.bf16.msra.mxu0 %v2057
    %2474 = vmatprep.mubr.bf16.mxu0 %v740
    %2475 = vmatmul.mubr.bf16.gmra.mrb[0].mxu0 %v739
    %v2476 = vpop.f32.mrb[0].mxu0
    %v2477 = vadd.f32 %v2436, %v2476
    %v2478 = vpop.f32.mrb[0].mxu0
    %v2479 = vadd.f32 %v2438, %v2478
    %v2480 = vpop.f32.mrb[0].mxu0
    %v2481 = vpop.f32.mrb[0].mxu0
    %2482 = vdwg.mxu0
    %2483 = vmatprep.subr.bf16.mxu0 %v1812
    %2484 = vmatpush1.bf16.msra.mxu0 %v1811
    %2485 = vmatprep.subr.bf16.mxu0 %v1820
    %2486 = vmatpush1.bf16.msra.mxu0 %v1819
    %2487 = vmatprep.subr.bf16.mxu0 %v1828
    %2488 = vmatpush1.bf16.msra.mxu0 %v1827
    %2489 = vmatprep.subr.bf16.mxu0 %v1836
    %2490 = vmatpush1.bf16.msra.mxu0 %v1835
    %2491 = vmatprep.subr.bf16.mxu0 %v1844
    %2492 = vmatpush1.bf16.msra.mxu0 %v1843
    %2493 = vmatprep.subr.bf16.mxu0 %v1852
    %2494 = vmatpush1.bf16.msra.mxu0 %v1851
    %2495 = vmatprep.subr.bf16.mxu0 %v1860
    %2496 = vmatpush1.bf16.msra.mxu0 %v1859
    %2497 = vmatprep.subr.bf16.mxu0 %v1868
    %2498 = vmatpush1.bf16.msra.mxu0 %v1867
    %2499 = vmatprep.subr.bf16.mxu0 %v1876
    %2500 = vmatpush1.bf16.msra.mxu0 %v1875
    %2501 = vmatprep.subr.bf16.mxu0 %v1884
    %2502 = vmatpush1.bf16.msra.mxu0 %v1883
    %2503 = vmatprep.subr.bf16.mxu0 %v1892
    %2504 = vmatpush1.bf16.msra.mxu0 %v1891
    %2505 = vmatprep.subr.bf16.mxu0 %v1900
    %2506 = vmatpush1.bf16.msra.mxu0 %v1899
    %2507 = vmatprep.subr.bf16.mxu0 %v1908
    %2508 = vmatpush1.bf16.msra.mxu0 %v1907
    %2509 = vmatprep.subr.bf16.mxu0 %v1916
    %2510 = vmatpush1.bf16.msra.mxu0 %v1915
    %2511 = vmatprep.subr.bf16.mxu0 %v1924
    %2512 = vmatpush1.bf16.msra.mxu0 %v1923
    %2513 = vmatprep.subr.bf16.mxu0 %v1932
    %2514 = vmatpush1.bf16.msra.mxu0 %v1931
    %2515 = vmatprep.mubr.bf16.mxu0 %v738
    %2516 = vmatmul.mubr.bf16.gmra.mrb[0].mxu0 %v737
    %v2517 = vpop.f32.mrb[0].mxu0
    %v2518 = vadd.f32 %v1018, %v2517
    %v2519 = vpop.f32.mrb[0].mxu0
    %v2520 = vadd.f32 %v1022, %v2519
    %v2521 = vpop.f32.mrb[0].mxu0
    %v2522 = vpop.f32.mrb[0].mxu0
    %2523 = vdwg.mxu0
    %2524 = vmatprep.subr.bf16.mxu0 %v1940
    %2525 = vmatpush1.bf16.msra.mxu0 %v1939
    %2526 = vmatprep.subr.bf16.mxu0 %v1948
    %2527 = vmatpush1.bf16.msra.mxu0 %v1947
    %2528 = vmatprep.subr.bf16.mxu0 %v1956
    %2529 = vmatpush1.bf16.msra.mxu0 %v1955
    %2530 = vmatprep.subr.bf16.mxu0 %v1964
    %2531 = vmatpush1.bf16.msra.mxu0 %v1963
    %2532 = vmatprep.subr.bf16.mxu0 %v1972
    %2533 = vmatpush1.bf16.msra.mxu0 %v1971
    %2534 = vmatprep.subr.bf16.mxu0 %v1980
    %2535 = vmatpush1.bf16.msra.mxu0 %v1979
    %2536 = vmatprep.subr.bf16.mxu0 %v1988
    %2537 = vmatpush1.bf16.msra.mxu0 %v1987
    %2538 = vmatprep.subr.bf16.mxu0 %v1996
    %2539 = vmatpush1.bf16.msra.mxu0 %v1995
    %2540 = vmatprep.subr.bf16.mxu0 %v2004
    %2541 = vmatpush1.bf16.msra.mxu0 %v2003
    %2542 = vmatprep.subr.bf16.mxu0 %v2012
    %2543 = vmatpush1.bf16.msra.mxu0 %v2011
    %2544 = vmatprep.subr.bf16.mxu0 %v2020
    %2545 = vmatpush1.bf16.msra.mxu0 %v2019
    %2546 = vmatprep.subr.bf16.mxu0 %v2028
    %2547 = vmatpush1.bf16.msra.mxu0 %v2027
    %2548 = vmatprep.subr.bf16.mxu0 %v2036
    %2549 = vmatpush1.bf16.msra.mxu0 %v2035
    %2550 = vmatprep.subr.bf16.mxu0 %v2044
    %2551 = vmatpush1.bf16.msra.mxu0 %v2043
    %2552 = vmatprep.subr.bf16.mxu0 %v2052
    %2553 = vmatpush1.bf16.msra.mxu0 %v2051
    %2554 = vmatprep.subr.bf16.mxu0 %v2060
    %2555 = vmatpush1.bf16.msra.mxu0 %v2059
    %2556 = vmatprep.mubr.bf16.mxu0 %v740
    %2557 = vmatmul.mubr.bf16.gmra.mrb[0].mxu0 %v739
    %v2558 = vpop.f32.mrb[0].mxu0
    %v2559 = vadd.f32 %v2518, %v2558
    %v2560 = vpop.f32.mrb[0].mxu0
    %v2561 = vadd.f32 %v2520, %v2560
    %v2562 = vpop.f32.mrb[0].mxu0
    %v2563 = vpop.f32.mrb[0].mxu0
    %2564 = vdwg.mxu0
    %2565 = vmatprep.subr.bf16.mxu0 %v1814
    %2566 = vmatpush1.bf16.msra.mxu0 %v1813
    %2567 = vmatprep.subr.bf16.mxu0 %v1822
    %2568 = vmatpush1.bf16.msra.mxu0 %v1821
    %2569 = vmatprep.subr.bf16.mxu0 %v1830
    %2570 = vmatpush1.bf16.msra.mxu0 %v1829
    %2571 = vmatprep.subr.bf16.mxu0 %v1838
    %2572 = vmatpush1.bf16.msra.mxu0 %v1837
    %2573 = vmatprep.subr.bf16.mxu0 %v1846
    %2574 = vmatpush1.bf16.msra.mxu0 %v1845
    %2575 = vmatprep.subr.bf16.mxu0 %v1854
    %2576 = vmatpush1.bf16.msra.mxu0 %v1853
    %2577 = vmatprep.subr.bf16.mxu0 %v1862
    %2578 = vmatpush1.bf16.msra.mxu0 %v1861
    %2579 = vmatprep.subr.bf16.mxu0 %v1870
    %2580 = vmatpush1.bf16.msra.mxu0 %v1869
    %2581 = vmatprep.subr.bf16.mxu0 %v1878
    %2582 = vmatpush1.bf16.msra.mxu0 %v1877
    %2583 = vmatprep.subr.bf16.mxu0 %v1886
    %2584 = vmatpush1.bf16.msra.mxu0 %v1885
    %2585 = vmatprep.subr.bf16.mxu0 %v1894
    %2586 = vmatpush1.bf16.msra.mxu0 %v1893
    %2587 = vmatprep.subr.bf16.mxu0 %v1902
    %2588 = vmatpush1.bf16.msra.mxu0 %v1901
    %2589 = vmatprep.subr.bf16.mxu0 %v1910
    %2590 = vmatpush1.bf16.msra.mxu0 %v1909
    %2591 = vmatprep.subr.bf16.mxu0 %v1918
    %2592 = vmatpush1.bf16.msra.mxu0 %v1917
    %2593 = vmatprep.subr.bf16.mxu0 %v1926
    %2594 = vmatpush1.bf16.msra.mxu0 %v1925
    %2595 = vmatprep.subr.bf16.mxu0 %v1934
    %2596 = vmatpush1.bf16.msra.mxu0 %v1933
    %2597 = vmatprep.mubr.bf16.mxu0 %v738
    %2598 = vmatmul.mubr.bf16.gmra.mrb[0].mxu0 %v737
    %v2599 = vpop.f32.mrb[0].mxu0
    %v2600 = vadd.f32 %v1026, %v2599
    %v2601 = vpop.f32.mrb[0].mxu0
    %v2602 = vadd.f32 %v1030, %v2601
    %v2603 = vpop.f32.mrb[0].mxu0
    %v2604 = vpop.f32.mrb[0].mxu0
    %2605 = vdwg.mxu0
    %2606 = vmatprep.subr.bf16.mxu0 %v1942
    %2607 = vmatpush1.bf16.msra.mxu0 %v1941
    %2608 = vmatprep.subr.bf16.mxu0 %v1950
    %2609 = vmatpush1.bf16.msra.mxu0 %v1949
    %2610 = vmatprep.subr.bf16.mxu0 %v1958
    %2611 = vmatpush1.bf16.msra.mxu0 %v1957
    %2612 = vmatprep.subr.bf16.mxu0 %v1966
    %2613 = vmatpush1.bf16.msra.mxu0 %v1965
    %2614 = vmatprep.subr.bf16.mxu0 %v1974
    %2615 = vmatpush1.bf16.msra.mxu0 %v1973
    %2616 = vmatprep.subr.bf16.mxu0 %v1982
    %2617 = vmatpush1.bf16.msra.mxu0 %v1981
    %2618 = vmatprep.subr.bf16.mxu0 %v1990
    %2619 = vmatpush1.bf16.msra.mxu0 %v1989
    %2620 = vmatprep.subr.bf16.mxu0 %v1998
    %2621 = vmatpush1.bf16.msra.mxu0 %v1997
    %2622 = vmatprep.subr.bf16.mxu0 %v2006
    %2623 = vmatpush1.bf16.msra.mxu0 %v2005
    %2624 = vmatprep.subr.bf16.mxu0 %v2014
    %2625 = vmatpush1.bf16.msra.mxu0 %v2013
    %2626 = vmatprep.subr.bf16.mxu0 %v2022
    %2627 = vmatpush1.bf16.msra.mxu0 %v2021
    %2628 = vmatprep.subr.bf16.mxu0 %v2030
    %2629 = vmatpush1.bf16.msra.mxu0 %v2029
    %2630 = vmatprep.subr.bf16.mxu0 %v2038
    %2631 = vmatpush1.bf16.msra.mxu0 %v2037
    %2632 = vmatprep.subr.bf16.mxu0 %v2046
    %2633 = vmatpush1.bf16.msra.mxu0 %v2045
    %2634 = vmatprep.subr.bf16.mxu0 %v2054
    %2635 = vmatpush1.bf16.msra.mxu0 %v2053
    %2636 = vmatprep.subr.bf16.mxu0 %v2062
    %2637 = vmatpush1.bf16.msra.mxu0 %v2061
    %2638 = vmatprep.mubr.bf16.mxu0 %v740
    %2639 = vmatmul.mubr.bf16.gmra.mrb[0].mxu0 %v739
    %v2640 = vpop.f32.mrb[0].mxu0
    %v2641 = vadd.f32 %v2600, %v2640
    %v2642 = vpop.f32.mrb[0].mxu0
    %v2643 = vadd.f32 %v2602, %v2642
    %v2644 = vpop.f32.mrb[0].mxu0
    %v2645 = vpop.f32.mrb[0].mxu0
    %2646 = vdwg.mxu0
    %v2647 = vmax.f32 %v2395, 0.0
    %v2648 = vmax.f32 %v2397, 0.0
    %v2649 = vmax.f32 %v2477, 0.0
    %v2650 = vmax.f32 %v2479, 0.0
    %v2651 = vmax.f32 %v2559, 0.0
    %v2652 = vmax.f32 %v2561, 0.0
    %v2653 = vmax.f32 %v2641, 0.0
    %v2654 = vmax.f32 %v2643, 0.0
    %v2655 = vpack.c.bf16 %v2647, %v2647
    %v2656 = vpack.c.bf16 %v2648, %v2648
    %v2657 = vpack.c.bf16 %v2649, %v2649
    %v2658 = vpack.c.bf16 %v2650, %v2650
    %v2659 = vpack.c.bf16 %v2651, %v2651
    %v2660 = vpack.c.bf16 %v2652, %v2652
    %v2661 = vpack.c.bf16 %v2653, %v2653
    %v2662 = vpack.c.bf16 %v2654, %v2654
    %v2663 = vld [vmem:[#allocation10] sm:$0xf]
    %v2664 = vld [vmem:[#allocation10 + $0x4] sm:$0xf]
    %v2665 = vld [vmem:[#allocation10 + $0x8] sm:$0xf]
    %v2666 = vld [vmem:[#allocation10 + $0xc] sm:$0xf]
    %v2667 = vld [vmem:[#allocation10 + $0x10] sm:$0xf]
    %v2668 = vld [vmem:[#allocation10 + $0x14] sm:$0xf]
    %v2669 = vld [vmem:[#allocation10 + $0x18] sm:$0xf]
    %v2670 = vld [vmem:[#allocation10 + $0x1c] sm:$0xf]
    %v2671 = vld [vmem:[#allocation10 + $0x20] sm:$0xf]
    %v2672 = vld [vmem:[#allocation10 + $0x24] sm:$0xf]
    %v2673 = vld [vmem:[#allocation10 + $0x28] sm:$0xf]
    %v2674 = vld [vmem:[#allocation10 + $0x2c] sm:$0xf]
    %v2675 = vld [vmem:[#allocation10 + $0x30] sm:$0xf]
    %v2676 = vld [vmem:[#allocation10 + $0x34] sm:$0xf]
    %v2677 = vld [vmem:[#allocation10 + $0x38] sm:$0xf]
    %v2678 = vld [vmem:[#allocation10 + $0x3c] sm:$0xf]
    %v2679 = vld [vmem:[#allocation10 + $0x40] sm:$0xf]
    %v2680 = vld [vmem:[#allocation10 + $0x44] sm:$0xf]
    %v2681 = vld [vmem:[#allocation10 + $0x48] sm:$0xf]
    %v2682 = vld [vmem:[#allocation10 + $0x4c] sm:$0xf]
    %v2683 = vld [vmem:[#allocation10 + $0x50] sm:$0xf]
    %v2684 = vld [vmem:[#allocation10 + $0x54] sm:$0xf]
    %v2685 = vld [vmem:[#allocation10 + $0x58] sm:$0xf]
    %v2686 = vld [vmem:[#allocation10 + $0x5c] sm:$0xf]
    %v2687 = vld [vmem:[#allocation10 + $0x60] sm:$0xf]
    %v2688 = vld [vmem:[#allocation10 + $0x64] sm:$0xf]
    %v2689 = vld [vmem:[#allocation10 + $0x68] sm:$0xf]
    %v2690 = vld [vmem:[#allocation10 + $0x6c] sm:$0xf]
    %v2691 = vld [vmem:[#allocation10 + $0x70] sm:$0xf]
    %v2692 = vld [vmem:[#allocation10 + $0x74] sm:$0xf]
    %v2693 = vld [vmem:[#allocation10 + $0x78] sm:$0xf]
    %v2694 = vld [vmem:[#allocation10 + $0x7c] sm:$0xf]
    %v2695 = vld [vmem:[#allocation10 + $0x80] sm:$0xf]
    %v2696 = vld [vmem:[#allocation10 + $0x84] sm:$0xf]
    %v2697 = vld [vmem:[#allocation10 + $0x88] sm:$0xf]
    %v2698 = vld [vmem:[#allocation10 + $0x8c] sm:$0xf]
    %v2699 = vld [vmem:[#allocation10 + $0x90] sm:$0xf]
    %v2700 = vld [vmem:[#allocation10 + $0x94] sm:$0xf]
    %v2701 = vld [vmem:[#allocation10 + $0x98] sm:$0xf]
    %v2702 = vld [vmem:[#allocation10 + $0x9c] sm:$0xf]
    %v2703 = vld [vmem:[#allocation10 + $0xa0] sm:$0xf]
    %v2704 = vld [vmem:[#allocation10 + $0xa4] sm:$0xf]
    %v2705 = vld [vmem:[#allocation10 + $0xa8] sm:$0xf]
    %v2706 = vld [vmem:[#allocation10 + $0xac] sm:$0xf]
    %v2707 = vld [vmem:[#allocation10 + $0xb0] sm:$0xf]
    %v2708 = vld [vmem:[#allocation10 + $0xb4] sm:$0xf]
    %v2709 = vld [vmem:[#allocation10 + $0xb8] sm:$0xf]
    %v2710 = vld [vmem:[#allocation10 + $0xbc] sm:$0xf]
    %v2711 = vld [vmem:[#allocation10 + $0xc0] sm:$0xf]
    %v2712 = vld [vmem:[#allocation10 + $0xc4] sm:$0xf]
    %v2713 = vld [vmem:[#allocation10 + $0xc8] sm:$0xf]
    %v2714 = vld [vmem:[#allocation10 + $0xcc] sm:$0xf]
    %v2715 = vld [vmem:[#allocation10 + $0xd0] sm:$0xf]
    %v2716 = vld [vmem:[#allocation10 + $0xd4] sm:$0xf]
    %v2717 = vld [vmem:[#allocation10 + $0xd8] sm:$0xf]
    %v2718 = vld [vmem:[#allocation10 + $0xdc] sm:$0xf]
    %v2719 = vld [vmem:[#allocation10 + $0xe0] sm:$0xf]
    %v2720 = vld [vmem:[#allocation10 + $0xe4] sm:$0xf]
    %v2721 = vld [vmem:[#allocation10 + $0xe8] sm:$0xf]
    %v2722 = vld [vmem:[#allocation10 + $0xec] sm:$0xf]
    %v2723 = vld [vmem:[#allocation10 + $0xf0] sm:$0xf]
    %v2724 = vld [vmem:[#allocation10 + $0xf4] sm:$0xf]
    %v2725 = vld [vmem:[#allocation10 + $0xf8] sm:$0xf]
    %v2726 = vld [vmem:[#allocation10 + $0xfc] sm:$0xf]
    %v2727 = vld [vmem:[#allocation10 + $0x100] sm:$0xf]
    %v2728 = vld [vmem:[#allocation10 + $0x104] sm:$0xf]
    %v2729 = vld [vmem:[#allocation10 + $0x108] sm:$0xf]
    %v2730 = vld [vmem:[#allocation10 + $0x10c] sm:$0xf]
    %v2731 = vld [vmem:[#allocation10 + $0x110] sm:$0xf]
    %v2732 = vld [vmem:[#allocation10 + $0x114] sm:$0xf]
    %v2733 = vld [vmem:[#allocation10 + $0x118] sm:$0xf]
    %v2734 = vld [vmem:[#allocation10 + $0x11c] sm:$0xf]
    %v2735 = vld [vmem:[#allocation10 + $0x120] sm:$0xf]
    %v2736 = vld [vmem:[#allocation10 + $0x124] sm:$0xf]
    %v2737 = vld [vmem:[#allocation10 + $0x128] sm:$0xf]
    %v2738 = vld [vmem:[#allocation10 + $0x12c] sm:$0xf]
    %v2739 = vld [vmem:[#allocation10 + $0x130] sm:$0xf]
    %v2740 = vld [vmem:[#allocation10 + $0x134] sm:$0xf]
    %v2741 = vld [vmem:[#allocation10 + $0x138] sm:$0xf]
    %v2742 = vld [vmem:[#allocation10 + $0x13c] sm:$0xf]
    %v2743 = vld [vmem:[#allocation10 + $0x140] sm:$0xf]
    %v2744 = vld [vmem:[#allocation10 + $0x144] sm:$0xf]
    %v2745 = vld [vmem:[#allocation10 + $0x148] sm:$0xf]
    %v2746 = vld [vmem:[#allocation10 + $0x14c] sm:$0xf]
    %v2747 = vld [vmem:[#allocation10 + $0x150] sm:$0xf]
    %v2748 = vld [vmem:[#allocation10 + $0x154] sm:$0xf]
    %v2749 = vld [vmem:[#allocation10 + $0x158] sm:$0xf]
    %v2750 = vld [vmem:[#allocation10 + $0x15c] sm:$0xf]
    %v2751 = vld [vmem:[#allocation10 + $0x160] sm:$0xf]
    %v2752 = vld [vmem:[#allocation10 + $0x164] sm:$0xf]
    %v2753 = vld [vmem:[#allocation10 + $0x168] sm:$0xf]
    %v2754 = vld [vmem:[#allocation10 + $0x16c] sm:$0xf]
    %v2755 = vld [vmem:[#allocation10 + $0x170] sm:$0xf]
    %v2756 = vld [vmem:[#allocation10 + $0x174] sm:$0xf]
    %v2757 = vld [vmem:[#allocation10 + $0x178] sm:$0xf]
    %v2758 = vld [vmem:[#allocation10 + $0x17c] sm:$0xf]
    %v2759 = vld [vmem:[#allocation10 + $0x180] sm:$0xf]
    %v2760 = vld [vmem:[#allocation10 + $0x184] sm:$0xf]
    %v2761 = vld [vmem:[#allocation10 + $0x188] sm:$0xf]
    %v2762 = vld [vmem:[#allocation10 + $0x18c] sm:$0xf]
    %v2763 = vld [vmem:[#allocation10 + $0x190] sm:$0xf]
    %v2764 = vld [vmem:[#allocation10 + $0x194] sm:$0xf]
    %v2765 = vld [vmem:[#allocation10 + $0x198] sm:$0xf]
    %v2766 = vld [vmem:[#allocation10 + $0x19c] sm:$0xf]
    %v2767 = vld [vmem:[#allocation10 + $0x1a0] sm:$0xf]
    %v2768 = vld [vmem:[#allocation10 + $0x1a4] sm:$0xf]
    %v2769 = vld [vmem:[#allocation10 + $0x1a8] sm:$0xf]
    %v2770 = vld [vmem:[#allocation10 + $0x1ac] sm:$0xf]
    %v2771 = vld [vmem:[#allocation10 + $0x1b0] sm:$0xf]
    %v2772 = vld [vmem:[#allocation10 + $0x1b4] sm:$0xf]
    %v2773 = vld [vmem:[#allocation10 + $0x1b8] sm:$0xf]
    %v2774 = vld [vmem:[#allocation10 + $0x1bc] sm:$0xf]
    %v2775 = vld [vmem:[#allocation10 + $0x1c0] sm:$0xf]
    %v2776 = vld [vmem:[#allocation10 + $0x1c4] sm:$0xf]
    %v2777 = vld [vmem:[#allocation10 + $0x1c8] sm:$0xf]
    %v2778 = vld [vmem:[#allocation10 + $0x1cc] sm:$0xf]
    %v2779 = vld [vmem:[#allocation10 + $0x1d0] sm:$0xf]
    %v2780 = vld [vmem:[#allocation10 + $0x1d4] sm:$0xf]
    %v2781 = vld [vmem:[#allocation10 + $0x1d8] sm:$0xf]
    %v2782 = vld [vmem:[#allocation10 + $0x1dc] sm:$0xf]
    %v2783 = vld [vmem:[#allocation10 + $0x1e0] sm:$0xf]
    %v2784 = vld [vmem:[#allocation10 + $0x1e4] sm:$0xf]
    %v2785 = vld [vmem:[#allocation10 + $0x1e8] sm:$0xf]
    %v2786 = vld [vmem:[#allocation10 + $0x1ec] sm:$0xf]
    %v2787 = vld [vmem:[#allocation10 + $0x1f0] sm:$0xf]
    %v2788 = vld [vmem:[#allocation10 + $0x1f4] sm:$0xf]
    %v2789 = vld [vmem:[#allocation10 + $0x1f8] sm:$0xf]
    %v2790 = vld [vmem:[#allocation10 + $0x1fc] sm:$0xf]
    %v2791 = vld [vmem:[%s5 + $0xe] sm:$0x1]
    %v2793 = vlaneseq
    %v2794 = vshrl.u32 %v2793, 7
    %v2795 = vsub.s32 0, %v2794
    %v2796 = vrot.slane %v2791, %v2795
    %v2926 = vunpack.c.l.b16 %v2663
    %v2927 = vunpack.c.l.b16 %v2664
    %v2928 = vunpack.c.l.b16 %v2665
    %v2929 = vunpack.c.l.b16 %v2666
    %v2930 = vunpack.c.l.b16 %v2667
    %v2931 = vunpack.c.l.b16 %v2668
    %v2932 = vunpack.c.l.b16 %v2669
    %v2933 = vunpack.c.l.b16 %v2670
    %v2934 = vunpack.c.l.b16 %v2671
    %v2935 = vunpack.c.l.b16 %v2672
    %v2936 = vunpack.c.l.b16 %v2673
    %v2937 = vunpack.c.l.b16 %v2674
    %v2938 = vunpack.c.l.b16 %v2675
    %v2939 = vunpack.c.l.b16 %v2676
    %v2940 = vunpack.c.l.b16 %v2677
    %v2941 = vunpack.c.l.b16 %v2678
    %v2942 = vunpack.c.l.b16 %v2679
    %v2943 = vunpack.c.l.b16 %v2680
    %v2944 = vunpack.c.l.b16 %v2681
    %v2945 = vunpack.c.l.b16 %v2682
    %v2946 = vunpack.c.l.b16 %v2683
    %v2947 = vunpack.c.l.b16 %v2684
    %v2948 = vunpack.c.l.b16 %v2685
    %v2949 = vunpack.c.l.b16 %v2686
    %v2950 = vunpack.c.l.b16 %v2687
    %v2951 = vunpack.c.l.b16 %v2688
    %v2952 = vunpack.c.l.b16 %v2689
    %v2953 = vunpack.c.l.b16 %v2690
    %v2954 = vunpack.c.l.b16 %v2691
    %v2955 = vunpack.c.l.b16 %v2692
    %v2956 = vunpack.c.l.b16 %v2693
    %v2957 = vunpack.c.l.b16 %v2694
    %v2958 = vunpack.c.l.b16 %v2695
    %v2959 = vunpack.c.l.b16 %v2696
    %v2960 = vunpack.c.l.b16 %v2697
    %v2961 = vunpack.c.l.b16 %v2698
    %v2962 = vunpack.c.l.b16 %v2699
    %v2963 = vunpack.c.l.b16 %v2700
    %v2964 = vunpack.c.l.b16 %v2701
    %v2965 = vunpack.c.l.b16 %v2702
    %v2966 = vunpack.c.l.b16 %v2703
    %v2967 = vunpack.c.l.b16 %v2704
    %v2968 = vunpack.c.l.b16 %v2705
    %v2969 = vunpack.c.l.b16 %v2706
    %v2970 = vunpack.c.l.b16 %v2707
    %v2971 = vunpack.c.l.b16 %v2708
    %v2972 = vunpack.c.l.b16 %v2709
    %v2973 = vunpack.c.l.b16 %v2710
    %v2974 = vunpack.c.l.b16 %v2711
    %v2975 = vunpack.c.l.b16 %v2712
    %v2976 = vunpack.c.l.b16 %v2713
    %v2977 = vunpack.c.l.b16 %v2714
    %v2978 = vunpack.c.l.b16 %v2715
    %v2979 = vunpack.c.l.b16 %v2716
    %v2980 = vunpack.c.l.b16 %v2717
    %v2981 = vunpack.c.l.b16 %v2718
    %v2982 = vunpack.c.l.b16 %v2719
    %v2983 = vunpack.c.l.b16 %v2720
    %v2984 = vunpack.c.l.b16 %v2721
    %v2985 = vunpack.c.l.b16 %v2722
    %v2986 = vunpack.c.l.b16 %v2723
    %v2987 = vunpack.c.l.b16 %v2724
    %v2988 = vunpack.c.l.b16 %v2725
    %v2989 = vunpack.c.l.b16 %v2726
    %v2990 = vunpack.c.l.b16 %v2727
    %v2991 = vunpack.c.l.b16 %v2728
    %v2992 = vunpack.c.l.b16 %v2729
    %v2993 = vunpack.c.l.b16 %v2730
    %v2994 = vunpack.c.l.b16 %v2731
    %v2995 = vunpack.c.l.b16 %v2732
    %v2996 = vunpack.c.l.b16 %v2733
    %v2997 = vunpack.c.l.b16 %v2734
    %v2998 = vunpack.c.l.b16 %v2735
    %v2999 = vunpack.c.l.b16 %v2736
    %v3000 = vunpack.c.l.b16 %v2737
    %v3001 = vunpack.c.l.b16 %v2738
    %v3002 = vunpack.c.l.b16 %v2739
    %v3003 = vunpack.c.l.b16 %v2740
    %v3004 = vunpack.c.l.b16 %v2741
    %v3005 = vunpack.c.l.b16 %v2742
    %v3006 = vunpack.c.l.b16 %v2743
    %v3007 = vunpack.c.l.b16 %v2744
    %v3008 = vunpack.c.l.b16 %v2745
    %v3009 = vunpack.c.l.b16 %v2746
    %v3010 = vunpack.c.l.b16 %v2747
    %v3011 = vunpack.c.l.b16 %v2748
    %v3012 = vunpack.c.l.b16 %v2749
    %v3013 = vunpack.c.l.b16 %v2750
    %v3014 = vunpack.c.l.b16 %v2751
    %v3015 = vunpack.c.l.b16 %v2752
    %v3016 = vunpack.c.l.b16 %v2753
    %v3017 = vunpack.c.l.b16 %v2754
    %v3018 = vunpack.c.l.b16 %v2755
    %v3019 = vunpack.c.l.b16 %v2756
    %v3020 = vunpack.c.l.b16 %v2757
    %v3021 = vunpack.c.l.b16 %v2758
    %v3022 = vunpack.c.l.b16 %v2759
    %v3023 = vunpack.c.l.b16 %v2760
    %v3024 = vunpack.c.l.b16 %v2761
    %v3025 = vunpack.c.l.b16 %v2762
    %v3026 = vunpack.c.l.b16 %v2763
    %v3027 = vunpack.c.l.b16 %v2764
    %v3028 = vunpack.c.l.b16 %v2765
    %v3029 = vunpack.c.l.b16 %v2766
    %v3030 = vunpack.c.l.b16 %v2767
    %v3031 = vunpack.c.l.b16 %v2768
    %v3032 = vunpack.c.l.b16 %v2769
    %v3033 = vunpack.c.l.b16 %v2770
    %v3034 = vunpack.c.l.b16 %v2771
    %v3035 = vunpack.c.l.b16 %v2772
    %v3036 = vunpack.c.l.b16 %v2773
    %v3037 = vunpack.c.l.b16 %v2774
    %v3038 = vunpack.c.l.b16 %v2775
    %v3039 = vunpack.c.l.b16 %v2776
    %v3040 = vunpack.c.l.b16 %v2777
    %v3041 = vunpack.c.l.b16 %v2778
    %v3042 = vunpack.c.l.b16 %v2779
    %v3043 = vunpack.c.l.b16 %v2780
    %v3044 = vunpack.c.l.b16 %v2781
    %v3045 = vunpack.c.l.b16 %v2782
    %v3046 = vunpack.c.l.b16 %v2783
    %v3047 = vunpack.c.l.b16 %v2784
    %v3048 = vunpack.c.l.b16 %v2785
    %v3049 = vunpack.c.l.b16 %v2786
    %v3050 = vunpack.c.l.b16 %v2787
    %v3051 = vunpack.c.l.b16 %v2788
    %v3052 = vunpack.c.l.b16 %v2789
    %v3053 = vunpack.c.l.b16 %v2790
    %v3054 = vpack.c.b16 %v2927, %v2926
    %v3055 = vpack.c.b16 %v2929, %v2928
    %v3056 = vpack.c.b16 %v2931, %v2930
    %v3057 = vpack.c.b16 %v2933, %v2932
    %v3058 = vpack.c.b16 %v2935, %v2934
    %v3059 = vpack.c.b16 %v2937, %v2936
    %v3060 = vpack.c.b16 %v2939, %v2938
    %v3061 = vpack.c.b16 %v2941, %v2940
    %v3062 = vpack.c.b16 %v2943, %v2942
    %v3063 = vpack.c.b16 %v2945, %v2944
    %v3064 = vpack.c.b16 %v2947, %v2946
    %v3065 = vpack.c.b16 %v2949, %v2948
    %v3066 = vpack.c.b16 %v2951, %v2950
    %v3067 = vpack.c.b16 %v2953, %v2952
    %v3068 = vpack.c.b16 %v2955, %v2954
    %v3069 = vpack.c.b16 %v2957, %v2956
    %v3070 = vpack.c.b16 %v2959, %v2958
    %v3071 = vpack.c.b16 %v2961, %v2960
    %v3072 = vpack.c.b16 %v2963, %v2962
    %v3073 = vpack.c.b16 %v2965, %v2964
    %v3074 = vpack.c.b16 %v2967, %v2966
    %v3075 = vpack.c.b16 %v2969, %v2968
    %v3076 = vpack.c.b16 %v2971, %v2970
    %v3077 = vpack.c.b16 %v2973, %v2972
    %v3078 = vpack.c.b16 %v2975, %v2974
    %v3079 = vpack.c.b16 %v2977, %v2976
    %v3080 = vpack.c.b16 %v2979, %v2978
    %v3081 = vpack.c.b16 %v2981, %v2980
    %v3082 = vpack.c.b16 %v2983, %v2982
    %v3083 = vpack.c.b16 %v2985, %v2984
    %v3084 = vpack.c.b16 %v2987, %v2986
    %v3085 = vpack.c.b16 %v2989, %v2988
    %v3086 = vpack.c.b16 %v2991, %v2990
    %v3087 = vpack.c.b16 %v2993, %v2992
    %v3088 = vpack.c.b16 %v2995, %v2994
    %v3089 = vpack.c.b16 %v2997, %v2996
    %v3090 = vpack.c.b16 %v2999, %v2998
    %v3091 = vpack.c.b16 %v3001, %v3000
    %v3092 = vpack.c.b16 %v3003, %v3002
    %v3093 = vpack.c.b16 %v3005, %v3004
    %v3094 = vpack.c.b16 %v3007, %v3006
    %v3095 = vpack.c.b16 %v3009, %v3008
    %v3096 = vpack.c.b16 %v3011, %v3010
    %v3097 = vpack.c.b16 %v3013, %v3012
    %v3098 = vpack.c.b16 %v3015, %v3014
    %v3099 = vpack.c.b16 %v3017, %v3016
    %v3100 = vpack.c.b16 %v3019, %v3018
    %v3101 = vpack.c.b16 %v3021, %v3020
    %v3102 = vpack.c.b16 %v3023, %v3022
    %v3103 = vpack.c.b16 %v3025, %v3024
    %v3104 = vpack.c.b16 %v3027, %v3026
    %v3105 = vpack.c.b16 %v3029, %v3028
    %v3106 = vpack.c.b16 %v3031, %v3030
    %v3107 = vpack.c.b16 %v3033, %v3032
    %v3108 = vpack.c.b16 %v3035, %v3034
    %v3109 = vpack.c.b16 %v3037, %v3036
    %v3110 = vpack.c.b16 %v3039, %v3038
    %v3111 = vpack.c.b16 %v3041, %v3040
    %v3112 = vpack.c.b16 %v3043, %v3042
    %v3113 = vpack.c.b16 %v3045, %v3044
    %v3114 = vpack.c.b16 %v3047, %v3046
    %v3115 = vpack.c.b16 %v3049, %v3048
    %v3116 = vpack.c.b16 %v3051, %v3050
    %v3117 = vpack.c.b16 %v3053, %v3052
    %3182 = vmatprep.subr.bf16.mxu0 0
    %3183 = vmatpush1.bf16.msra.mxu0 %v3054
    %3184 = vmatprep.subr.bf16.mxu0 0
    %3185 = vmatpush1.bf16.msra.mxu0 %v3055
    %3186 = vmatprep.subr.bf16.mxu0 0
    %3187 = vmatpush1.bf16.msra.mxu0 %v3056
    %3188 = vmatprep.subr.bf16.mxu0 0
    %3189 = vmatpush1.bf16.msra.mxu0 %v3057
    %3190 = vmatprep.subr.bf16.mxu0 0
    %3191 = vmatpush1.bf16.msra.mxu0 %v3058
    %3192 = vmatprep.subr.bf16.mxu0 0
    %3193 = vmatpush1.bf16.msra.mxu0 %v3059
    %3194 = vmatprep.subr.bf16.mxu0 0
    %3195 = vmatpush1.bf16.msra.mxu0 %v3060
    %3196 = vmatprep.subr.bf16.mxu0 0
    %3197 = vmatpush1.bf16.msra.mxu0 %v3061
    %3198 = vmatprep.subr.bf16.mxu0 0
    %3199 = vmatpush1.bf16.msra.mxu0 %v3062
    %3200 = vmatprep.subr.bf16.mxu0 0
    %3201 = vmatpush1.bf16.msra.mxu0 %v3063
    %3202 = vmatprep.subr.bf16.mxu0 0
    %3203 = vmatpush1.bf16.msra.mxu0 %v3064
    %3204 = vmatprep.subr.bf16.mxu0 0
    %3205 = vmatpush1.bf16.msra.mxu0 %v3065
    %3206 = vmatprep.subr.bf16.mxu0 0
    %3207 = vmatpush1.bf16.msra.mxu0 %v3066
    %3208 = vmatprep.subr.bf16.mxu0 0
    %3209 = vmatpush1.bf16.msra.mxu0 %v3067
    %3210 = vmatprep.subr.bf16.mxu0 0
    %3211 = vmatpush1.bf16.msra.mxu0 %v3068
    %3212 = vmatprep.subr.bf16.mxu0 0
    %3213 = vmatpush1.bf16.msra.mxu0 %v3069
    %3214 = vmatprep.mubr.bf16.mxu0 %v2656
    %3215 = vmatmul.mubr.bf16.gmra.mrb[0].mxu0 %v2655
    %v3216 = vpop.f32.mrb[0].mxu0
    %v3217 = vadd.f32 %v2796, %v3216
    %v3218 = vpop.f32.mrb[0].mxu0
    %v3219 = vpop.f32.mrb[0].mxu0
    %v3220 = vpop.f32.mrb[0].mxu0
    %3221 = vdwg.mxu0
    %3222 = vmatprep.subr.bf16.mxu0 0
    %3223 = vmatpush1.bf16.msra.mxu0 %v3070
    %3224 = vmatprep.subr.bf16.mxu0 0
    %3225 = vmatpush1.bf16.msra.mxu0 %v3071
    %3226 = vmatprep.subr.bf16.mxu0 0
    %3227 = vmatpush1.bf16.msra.mxu0 %v3072
    %3228 = vmatprep.subr.bf16.mxu0 0
    %3229 = vmatpush1.bf16.msra.mxu0 %v3073
    %3230 = vmatprep.subr.bf16.mxu0 0
    %3231 = vmatpush1.bf16.msra.mxu0 %v3074
    %3232 = vmatprep.subr.bf16.mxu0 0
    %3233 = vmatpush1.bf16.msra.mxu0 %v3075
    %3234 = vmatprep.subr.bf16.mxu0 0
    %3235 = vmatpush1.bf16.msra.mxu0 %v3076
    %3236 = vmatprep.subr.bf16.mxu0 0
    %3237 = vmatpush1.bf16.msra.mxu0 %v3077
    %3238 = vmatprep.subr.bf16.mxu0 0
    %3239 = vmatpush1.bf16.msra.mxu0 %v3078
    %3240 = vmatprep.subr.bf16.mxu0 0
    %3241 = vmatpush1.bf16.msra.mxu0 %v3079
    %3242 = vmatprep.subr.bf16.mxu0 0
    %3243 = vmatpush1.bf16.msra.mxu0 %v3080
    %3244 = vmatprep.subr.bf16.mxu0 0
    %3245 = vmatpush1.bf16.msra.mxu0 %v3081
    %3246 = vmatprep.subr.bf16.mxu0 0
    %3247 = vmatpush1.bf16.msra.mxu0 %v3082
    %3248 = vmatprep.subr.bf16.mxu0 0
    %3249 = vmatpush1.bf16.msra.mxu0 %v3083
    %3250 = vmatprep.subr.bf16.mxu0 0
    %3251 = vmatpush1.bf16.msra.mxu0 %v3084
    %3252 = vmatprep.subr.bf16.mxu0 0
    %3253 = vmatpush1.bf16.msra.mxu0 %v3085
    %3254 = vmatprep.mubr.bf16.mxu0 %v2658
    %3255 = vmatmul.mubr.bf16.gmra.mrb[0].mxu0 %v2657
    %v3256 = vpop.f32.mrb[0].mxu0
    %v3257 = vadd.f32 %v3217, %v3256
    %v3258 = vpop.f32.mrb[0].mxu0
    %v3259 = vpop.f32.mrb[0].mxu0
    %v3260 = vpop.f32.mrb[0].mxu0
    %3261 = vdwg.mxu0
    %3262 = vmatprep.subr.bf16.mxu0 0
    %3263 = vmatpush1.bf16.msra.mxu0 %v3086
    %3264 = vmatprep.subr.bf16.mxu0 0
    %3265 = vmatpush1.bf16.msra.mxu0 %v3087
    %3266 = vmatprep.subr.bf16.mxu0 0
    %3267 = vmatpush1.bf16.msra.mxu0 %v3088
    %3268 = vmatprep.subr.bf16.mxu0 0
    %3269 = vmatpush1.bf16.msra.mxu0 %v3089
    %3270 = vmatprep.subr.bf16.mxu0 0
    %3271 = vmatpush1.bf16.msra.mxu0 %v3090
    %3272 = vmatprep.subr.bf16.mxu0 0
    %3273 = vmatpush1.bf16.msra.mxu0 %v3091
    %3274 = vmatprep.subr.bf16.mxu0 0
    %3275 = vmatpush1.bf16.msra.mxu0 %v3092
    %3276 = vmatprep.subr.bf16.mxu0 0
    %3277 = vmatpush1.bf16.msra.mxu0 %v3093
    %3278 = vmatprep.subr.bf16.mxu0 0
    %3279 = vmatpush1.bf16.msra.mxu0 %v3094
    %3280 = vmatprep.subr.bf16.mxu0 0
    %3281 = vmatpush1.bf16.msra.mxu0 %v3095
    %3282 = vmatprep.subr.bf16.mxu0 0
    %3283 = vmatpush1.bf16.msra.mxu0 %v3096
    %3284 = vmatprep.subr.bf16.mxu0 0
    %3285 = vmatpush1.bf16.msra.mxu0 %v3097
    %3286 = vmatprep.subr.bf16.mxu0 0
    %3287 = vmatpush1.bf16.msra.mxu0 %v3098
    %3288 = vmatprep.subr.bf16.mxu0 0
    %3289 = vmatpush1.bf16.msra.mxu0 %v3099
    %3290 = vmatprep.subr.bf16.mxu0 0
    %3291 = vmatpush1.bf16.msra.mxu0 %v3100
    %3292 = vmatprep.subr.bf16.mxu0 0
    %3293 = vmatpush1.bf16.msra.mxu0 %v3101
    %3294 = vmatprep.mubr.bf16.mxu0 %v2660
    %3295 = vmatmul.mubr.bf16.gmra.mrb[0].mxu0 %v2659
    %v3296 = vpop.f32.mrb[0].mxu0
    %v3297 = vadd.f32 %v3257, %v3296
    %v3298 = vpop.f32.mrb[0].mxu0
    %v3299 = vpop.f32.mrb[0].mxu0
    %v3300 = vpop.f32.mrb[0].mxu0
    %3301 = vdwg.mxu0
    %3302 = vmatprep.subr.bf16.mxu0 0
    %3303 = vmatpush1.bf16.msra.mxu0 %v3102
    %3304 = vmatprep.subr.bf16.mxu0 0
    %3305 = vmatpush1.bf16.msra.mxu0 %v3103
    %3306 = vmatprep.subr.bf16.mxu0 0
    %3307 = vmatpush1.bf16.msra.mxu0 %v3104
    %3308 = vmatprep.subr.bf16.mxu0 0
    %3309 = vmatpush1.bf16.msra.mxu0 %v3105
    %3310 = vmatprep.subr.bf16.mxu0 0
    %3311 = vmatpush1.bf16.msra.mxu0 %v3106
    %3312 = vmatprep.subr.bf16.mxu0 0
    %3313 = vmatpush1.bf16.msra.mxu0 %v3107
    %3314 = vmatprep.subr.bf16.mxu0 0
    %3315 = vmatpush1.bf16.msra.mxu0 %v3108
    %3316 = vmatprep.subr.bf16.mxu0 0
    %3317 = vmatpush1.bf16.msra.mxu0 %v3109
    %3318 = vmatprep.subr.bf16.mxu0 0
    %3319 = vmatpush1.bf16.msra.mxu0 %v3110
    %3320 = vmatprep.subr.bf16.mxu0 0
    %3321 = vmatpush1.bf16.msra.mxu0 %v3111
    %3322 = vmatprep.subr.bf16.mxu0 0
    %3323 = vmatpush1.bf16.msra.mxu0 %v3112
    %3324 = vmatprep.subr.bf16.mxu0 0
    %3325 = vmatpush1.bf16.msra.mxu0 %v3113
    %3326 = vmatprep.subr.bf16.mxu0 0
    %3327 = vmatpush1.bf16.msra.mxu0 %v3114
    %3328 = vmatprep.subr.bf16.mxu0 0
    %3329 = vmatpush1.bf16.msra.mxu0 %v3115
    %3330 = vmatprep.subr.bf16.mxu0 0
    %3331 = vmatpush1.bf16.msra.mxu0 %v3116
    %3332 = vmatprep.subr.bf16.mxu0 0
    %3333 = vmatpush1.bf16.msra.mxu0 %v3117
    %3334 = vmatprep.mubr.bf16.mxu0 %v2662
    %3335 = vmatmul.mubr.bf16.gmra.mrb[0].mxu0 %v2661
    %v3336 = vpop.f32.mrb[0].mxu0
    %v3337 = vadd.f32 %v3297, %v3336
    %v3338 = vpop.f32.mrb[0].mxu0
    %v3339 = vpop.f32.mrb[0].mxu0
    %v3340 = vpop.f32.mrb[0].mxu0
    %3341 = vdwg.mxu0
    %3342 = vst [vmem:[#allocation11] sm:$0xff] %v3337
    // Predicated region
    $region46: #{tpu_custom_call.1} parent=1 // pred_check
      _
    $region47: #{tpu_custom_call.1} parent=1 // pred_check_branch
      %3344 = sbr.rel (0) target = $region49
    $region48: #{tpu_custom_call.1} parent=1 // pred_region
      %s3346 = ssub.s32 128, 128
      %3347 = vsyncadd [#allocation4], %s3346
      %s3349 = sshll.u32 [#allocation11], 4
      %s3350 = int_to_ptr.vmem [resolvable:$true] %s3349
      %3352 = dma.vmem_to_hbm [thread:$0]  %s3350, 128, %s6, [#allocation4]
    $region49: #{tpu_custom_call.1} parent=1 // pred_fallthru
      _
    // Predicated region
    $region50: #{tpu_custom_call.1} parent=1 // pred_check
      _
    $region51: #{tpu_custom_call.1} parent=1 // pred_check_branch
      %3354 = sbr.rel (0) target = $region53
    $region52: #{tpu_custom_call.1} parent=1 // pred_region
      %3355 = dma.done [#allocation4], 128
    $region53: #{tpu_custom_call.1} parent=1 // pred_fallthru
      _
    %3356 = vsyncpa [#allocation3], 1
    %3357 = vsyncpa [#allocation6], 1
    %3358 = vsyncpa [#allocation9], 1
    %3359 = vsyncpa [#allocation4], 1

</llo_original>
